<compile_context>
chip_gen: v7x
topology: tpu7x:2x2x1
jax: 0.10.0
libtpu: 0.0.40
codegen_flags: <defaults>
</compile_context>

<pallas_src>
import jax
import jax.numpy as jnp
from jax.experimental import pallas as pl
from jax.experimental.pallas import tpu as pltpu

HIDDEN = 768        # BERT hidden size (module hardcodes 768)
ADAPTER_DIM = 64    # adapter bottleneck
ADAPTER_PAD = 128   # bottleneck padded to a full 128-lane vreg
NUM_LABELS = 2      # classifier output
LANE = 128          # lane-dense padded classifier width
ROW_TILE = 512      # adapter row tile (multiple of 256; fits v5e/v6e/v7x VMEM in bf16)


def _round_up(x, m):
    return ((x + m - 1) // m) * m


# ----------------------------------------------------------------------------
# Kernels
# ----------------------------------------------------------------------------
def fused_cls_kernel(x_ref, wd_ref, bd_ref, wu_ref, bu_ref, wc_ref, bc_ref, o_ref):
    """Fused CLS path: logits = (x + up(relu(down(x)))) @ Wc + bc  (bf16 in, fp32 acc)."""
    x_bf = x_ref[...]                                                       # [B, H] bf16
    x_f32 = x_bf.astype(jnp.float32)
    down = jnp.dot(x_bf, wd_ref[...], preferred_element_type=jnp.float32)   # [B, A_pad]
    down = down + bd_ref[...]
    act = jnp.maximum(down, 0.0)                                            # ReLU
    up = jnp.dot(act.astype(jnp.bfloat16), wu_ref[...],
                 preferred_element_type=jnp.float32) + bu_ref[...]          # [B, H]
    adapter = x_f32 + up                                                    # residual in fp32
    logits = jnp.dot(adapter.astype(jnp.bfloat16), wc_ref[...],
                     preferred_element_type=jnp.float32) + bc_ref[...]      # [B, LANE]
    o_ref[...] = logits.astype(o_ref.dtype)


def adapter_kernel(x_ref, wd_ref, bd_ref, wu_ref, bu_ref, o_ref):
    """Row-tiled AdapterModule: out = x + up(relu(down(x)))  (bf16 in/out, fp32 acc)."""
    x_bf = x_ref[...]                                                       # [TR, H] bf16
    down = jnp.dot(x_bf, wd_ref[...], preferred_element_type=jnp.float32)
    down = down + bd_ref[...]                                               # [TR, A_pad]
    act = jnp.maximum(down, 0.0)
    up = jnp.dot(act.astype(jnp.bfloat16), wu_ref[...],
                 preferred_element_type=jnp.float32) + bu_ref[...]          # [TR, H]
    o_ref[...] = (x_bf.astype(jnp.float32) + up).astype(o_ref.dtype)


# ----------------------------------------------------------------------------
# Wrappers
# ----------------------------------------------------------------------------
def fused_cls_forward(cls_bf16, packed):
    B, H = cls_bf16.shape
    A = packed["wd_bf"].shape[1]
    L = packed["wc_bf"].shape[1]

    def fb(shape):
        return pl.BlockSpec(shape, lambda i: (0,) * len(shape))

    return pl.pallas_call(
        fused_cls_kernel,
        out_shape=jax.ShapeDtypeStruct((B, L), jnp.float32),
        grid=(1,),
        in_specs=[
            fb((B, H)),
            fb((H, A)), fb((1, A)),
            fb((A, H)), fb((1, H)),
            fb((H, L)), fb((1, L)),
        ],
        out_specs=fb((B, L)),
        compiler_params=pltpu.CompilerParams(dimension_semantics=("arbitrary",)),
    )(cls_bf16, packed["wd_bf"], packed["bd2"], packed["wu_bf"], packed["bu2"],
      packed["wc_bf"], packed["bc2"])


def bert_with_adapter_head(last_hidden_state, packed):
    """Equivalent of BERTWithAdapter.forward given BERT's last hidden state.

    last_hidden_state: [B, S, H]  ->  logits: [B, NUM_LABELS]
    Only the CLS rows feed the logits, so the adapter+classifier are fused on
    [B, H] (avoids the S x wasted bandwidth of a full-sequence adapter pass).
    """
    cls = last_hidden_state[:, 0, :].astype(jnp.bfloat16)      # [B, H]
    logits_pad = fused_cls_forward(cls, packed)                # [B, LANE]
    return logits_pad[:, :NUM_LABELS]                          # [B, 2]


def adapter_module_forward(x, packed, *, row_tile=ROW_TILE):
    """General AdapterModule over a full [B, S, H] hidden state (row-tiled, pipelined)."""
    B, S, H = x.shape
    R = B * S
    x_flat = x.reshape(R, H).astype(jnp.bfloat16)
    TR = min(row_tile, _round_up(R, 8))
    A = packed["wd_bf"].shape[1]

    out = pl.pallas_call(
        adapter_kernel,
        out_shape=jax.ShapeDtypeStruct((R, H), jnp.bfloat16),
        grid=(pl.cdiv(R, TR),),
        in_specs=[
            pl.BlockSpec((TR, H), lambda i: (i, 0)),     # x: tiled over rows
            pl.BlockSpec((H, A), lambda i: (0, 0)),      # weights stay VMEM-resident
            pl.BlockSpec((1, A), lambda i: (0, 0)),
            pl.BlockSpec((A, H), lambda i: (0, 0)),
            pl.BlockSpec((1, H), lambda i: (0, 0)),
        ],
        out_specs=pl.BlockSpec((TR, H), lambda i: (i, 0)),
        compiler_params=pltpu.CompilerParams(dimension_semantics=("parallel",)),
    )(x_flat, packed["wd_bf"], packed["bd2"], packed["wu_bf"], packed["bu2"])
    return out.reshape(B, S, H)


# ----------------------------------------------------------------------------
# Parameters
# ----------------------------------------------------------------------------
def init_params(key):
    """Deterministic init matching AdapterModule.__init__ + classifier Linear(768, 2)."""
    k1, k2, k3 = jax.random.split(key, 3)
    # PyTorch weights are [out, in]; nn.init.normal_(std=0.02); biases zero.
    wd_pt = 0.02 * jax.random.normal(k1, (ADAPTER_DIM, HIDDEN), jnp.float32)
    wu_pt = 0.02 * jax.random.normal(k2, (HIDDEN, ADAPTER_DIM), jnp.float32)
    wc_pt = 0.02 * jax.random.normal(k3, (NUM_LABELS, HIDDEN), jnp.float32)
    return dict(
        wd_t=wd_pt.T,                                   # [H, A]  (y = x @ W.T + b)
        bd=jnp.zeros((ADAPTER_DIM,), jnp.float32),
        wu_t=wu_pt.T,                                   # [A, H]
        bu=jnp.zeros((HIDDEN,), jnp.float32),
        wc_t=wc_pt.T,                                   # [H, L]
        bc=jnp.zeros((NUM_LABELS,), jnp.float32),
    )


def pack_params(params):
    """Pad to lane-dense shapes and cast weights to bf16 for the kernels.

    Padding is exact: padded down-proj columns and up-proj rows are zero, so
    they contribute nothing through ReLU; padded classifier columns are
    sliced away in the wrapper.
    """
    wd = jnp.zeros((HIDDEN, ADAPTER_PAD), jnp.float32).at[:, :ADAPTER_DIM].set(params["wd_t"])
    wu = jnp.zeros((ADAPTER_PAD, HIDDEN), jnp.float32).at[:ADAPTER_DIM, :].set(params["wu_t"])
    wc = jnp.zeros((HIDDEN, LANE), jnp.float32).at[:, :NUM_LABELS].set(params["wc_t"])
    bd = jnp.zeros((1, ADAPTER_PAD), jnp.float32).at[0, :ADAPTER_DIM].set(params["bd"])
    bu = params["bu"].reshape(1, HIDDEN)
    bc = jnp.zeros((1, LANE), jnp.float32).at[0, :NUM_LABELS].set(params["bc"])
    return dict(
        wd_bf=wd.astype(jnp.bfloat16), bd2=bd,
        wu_bf=wu.astype(jnp.bfloat16), bu2=bu,
        wc_bf=wc.astype(jnp.bfloat16), bc2=bc,
    )


# ----------------------------------------------------------------------------
if __name__ == "__main__":
    key = jax.random.PRNGKey(0)
    k_x, k_p = jax.random.split(key)

    B, S = 2, 8  # small batch / sequence; hidden stays 768 as the module hardcodes it
    last_hidden_state = jax.random.normal(k_x, (B, S, HIDDEN), jnp.float32)
    params = init_params(k_p)
    packed = pack_params(params)

    # 1) Fused CLS-path kernel == BERTWithAdapter.forward (given BERT's output).
    logits = jax.block_until_ready(bert_with_adapter_head(last_hidden_state, packed))
    assert logits.shape == (B, NUM_LABELS)

    # Pure-JAX reference using the same bf16 / fp32-accumulate arithmetic.
    wd_bf = params["wd_t"].astype(jnp.bfloat16)
    wu_bf = params["wu_t"].astype(jnp.bfloat16)
    wc_bf = params["wc_t"].astype(jnp.bfloat16)
    cls_bf = last_hidden_state[:, 0, :].astype(jnp.bfloat16)
    down = jnp.dot(cls_bf, wd_bf, preferred_element_type=jnp.float32) + params["bd"]
    up = jnp.dot(jnp.maximum(down, 0.0).astype(jnp.bfloat16), wu_bf,
                 preferred_element_type=jnp.float32) + params["bu"]
    adapter_ref = cls_bf.astype(jnp.float32) + up
    ref_logits = jnp.dot(adapter_ref.astype(jnp.bfloat16), wc_bf,
                         preferred_element_type=jnp.float32) + params["bc"]
    assert jnp.allclose(logits, ref_logits, atol=2e-2, rtol=2e-2)

    # 2) Row-tiled full-sequence AdapterModule kernel sanity check.
    adapter_out = jax.block_until_ready(adapter_module_forward(last_hidden_state, packed))
    x_bf = last_hidden_state.reshape(B * S, HIDDEN).astype(jnp.bfloat16)
    d = jnp.dot(x_bf, wd_bf, preferred_element_type=jnp.float32) + params["bd"]
    u = jnp.dot(jnp.maximum(d, 0.0).astype(jnp.bfloat16), wu_bf,
                preferred_element_type=jnp.float32) + params["bu"]
    full_ref = (x_bf.astype(jnp.float32) + u).reshape(B, S, HIDDEN)
    assert adapter_out.shape == (B, S, HIDDEN)
    assert jnp.allclose(adapter_out.astype(jnp.float32), full_ref, atol=5e-2, rtol=5e-2)

    print("KERNEL_OK")
</pallas_src>

<mosaic_0001>
module attributes {stable_mosaic.version = 11 : i64} {
  func.func @fused_cls_kernel(%arg0: i32, %arg1: memref<2x768xbf16, #tpu.memory_space<vmem>>, %arg2: memref<768x128xbf16, #tpu.memory_space<vmem>>, %arg3: memref<1x128xf32, #tpu.memory_space<vmem>>, %arg4: memref<128x768xbf16, #tpu.memory_space<vmem>>, %arg5: memref<1x768xf32, #tpu.memory_space<vmem>>, %arg6: memref<768x128xbf16, #tpu.memory_space<vmem>>, %arg7: memref<1x128xf32, #tpu.memory_space<vmem>>, %arg8: memref<2x128xf32, #tpu.memory_space<vmem>>) attributes {dimension_semantics = [#tpu.dimension_semantics<arbitrary>], iteration_bounds = array<i64: 1>, scalar_prefetch = 0 : i64, scratch_operands = 0 : i64, tpu.core_type = #tpu.core_type<tc>, window_params = [{pipeline_mode = #tpu.pipeline_mode<synchronous>, transform_indices = @transform_0, window_bounds = array<i64: 2, 768>}, {pipeline_mode = #tpu.pipeline_mode<synchronous>, transform_indices = @transform_1, window_bounds = array<i64: 768, 128>}, {pipeline_mode = #tpu.pipeline_mode<synchronous>, transform_indices = @transform_2, window_bounds = array<i64: 1, 128>}, {pipeline_mode = #tpu.pipeline_mode<synchronous>, transform_indices = @transform_3, window_bounds = array<i64: 128, 768>}, {pipeline_mode = #tpu.pipeline_mode<synchronous>, transform_indices = @transform_4, window_bounds = array<i64: 1, 768>}, {pipeline_mode = #tpu.pipeline_mode<synchronous>, transform_indices = @transform_5, window_bounds = array<i64: 768, 128>}, {pipeline_mode = #tpu.pipeline_mode<synchronous>, transform_indices = @transform_6, window_bounds = array<i64: 1, 128>}, {pipeline_mode = #tpu.pipeline_mode<synchronous>, transform_indices = @transform_7, window_bounds = array<i64: 2, 128>}]} {
    %c0 = arith.constant 0 : index
    %c0_0 = arith.constant 0 : index
    %0 = vector.load %arg1[%c0, %c0_0] : memref<2x768xbf16, #tpu.memory_space<vmem>>, vector<2x768xbf16>
    %1 = arith.extf %0 : vector<2x768xbf16> to vector<2x768xf32>
    %c0_1 = arith.constant 0 : index
    %c0_2 = arith.constant 0 : index
    %2 = vector.load %arg2[%c0_1, %c0_2] : memref<768x128xbf16, #tpu.memory_space<vmem>>, vector<768x128xbf16>
    %cst = arith.constant dense<0.000000e+00> : vector<2x128xf32>
    %3 = tpu.matmul %0, %2, %cst {dimension_numbers = #tpu.dot_dimension_numbers<[1], [0], [0], [1], [0, 0, 1, 1], [], []>} : vector<2x768xbf16>, vector<768x128xbf16>, vector<2x128xf32> -> vector<2x128xf32>
    %c0_3 = arith.constant 0 : index
    %c0_4 = arith.constant 0 : index
    %4 = vector.load %arg3[%c0_3, %c0_4] : memref<1x128xf32, #tpu.memory_space<vmem>>, vector<1x128xf32>
    %5 = vector.broadcast %4 : vector<1x128xf32> to vector<2x128xf32>
    %6 = arith.addf %3, %5 : vector<2x128xf32>
    %cst_5 = arith.constant 0.000000e+00 : f32
    %7 = vector.broadcast %cst_5 : f32 to vector<2x128xf32>
    %8 = arith.maximumf %6, %7 : vector<2x128xf32>
    %9 = arith.truncf %8 : vector<2x128xf32> to vector<2x128xbf16>
    %c0_6 = arith.constant 0 : index
    %c0_7 = arith.constant 0 : index
    %10 = vector.load %arg4[%c0_6, %c0_7] : memref<128x768xbf16, #tpu.memory_space<vmem>>, vector<128x768xbf16>
    %cst_8 = arith.constant dense<0.000000e+00> : vector<2x768xf32>
    %11 = tpu.matmul %9, %10, %cst_8 {dimension_numbers = #tpu.dot_dimension_numbers<[1], [0], [0], [1], [0, 0, 1, 1], [], []>} : vector<2x128xbf16>, vector<128x768xbf16>, vector<2x768xf32> -> vector<2x768xf32>
    %c0_9 = arith.constant 0 : index
    %c0_10 = arith.constant 0 : index
    %12 = vector.load %arg5[%c0_9, %c0_10] : memref<1x768xf32, #tpu.memory_space<vmem>>, vector<1x768xf32>
    %13 = vector.broadcast %12 : vector<1x768xf32> to vector<2x768xf32>
    %14 = arith.addf %11, %13 : vector<2x768xf32>
    %15 = arith.addf %1, %14 : vector<2x768xf32>
    %16 = arith.truncf %15 : vector<2x768xf32> to vector<2x768xbf16>
    %c0_11 = arith.constant 0 : index
    %c0_12 = arith.constant 0 : index
    %17 = vector.load %arg6[%c0_11, %c0_12] : memref<768x128xbf16, #tpu.memory_space<vmem>>, vector<768x128xbf16>
    %cst_13 = arith.constant dense<0.000000e+00> : vector<2x128xf32>
    %18 = tpu.matmul %16, %17, %cst_13 {dimension_numbers = #tpu.dot_dimension_numbers<[1], [0], [0], [1], [0, 0, 1, 1], [], []>} : vector<2x768xbf16>, vector<768x128xbf16>, vector<2x128xf32> -> vector<2x128xf32>
    %c0_14 = arith.constant 0 : index
    %c0_15 = arith.constant 0 : index
    %19 = vector.load %arg7[%c0_14, %c0_15] : memref<1x128xf32, #tpu.memory_space<vmem>>, vector<1x128xf32>
    %20 = vector.broadcast %19 : vector<1x128xf32> to vector<2x128xf32>
    %21 = arith.addf %18, %20 : vector<2x128xf32>
    %c0_16 = arith.constant 0 : index
    %c0_17 = arith.constant 0 : index
    %22 = vector.load %arg8[%c0_16, %c0_17] : memref<2x128xf32, #tpu.memory_space<vmem>>, vector<2x128xf32>
    tpu.vector_store %arg8[%c0_16, %c0_17], %21 {strides = array<i32>} : memref<2x128xf32, #tpu.memory_space<vmem>>, vector<2x128xf32>,
    return
  }
  func.func @transform_0(%arg0: i32) -> (i32, i32) {
    %c0_i32 = arith.constant 0 : i32
    %c0_i32_0 = arith.constant 0 : i32
    %c0_i32_1 = arith.constant 0 : i32
    return %c0_i32, %c0_i32_0 : i32, i32
  }
  func.func @transform_1(%arg0: i32) -> (i32, i32) {
    %c0_i32 = arith.constant 0 : i32
    %c0_i32_0 = arith.constant 0 : i32
    %c0_i32_1 = arith.constant 0 : i32
    return %c0_i32, %c0_i32_0 : i32, i32
  }
  func.func @transform_2(%arg0: i32) -> (i32, i32) {
    %c0_i32 = arith.constant 0 : i32
    %c0_i32_0 = arith.constant 0 : i32
    %c0_i32_1 = arith.constant 0 : i32
    return %c0_i32, %c0_i32_0 : i32, i32
  }
  func.func @transform_3(%arg0: i32) -> (i32, i32) {
    %c0_i32 = arith.constant 0 : i32
    %c0_i32_0 = arith.constant 0 : i32
    %c0_i32_1 = arith.constant 0 : i32
    return %c0_i32, %c0_i32_0 : i32, i32
  }
  func.func @transform_4(%arg0: i32) -> (i32, i32) {
    %c0_i32 = arith.constant 0 : i32
    %c0_i32_0 = arith.constant 0 : i32
    %c0_i32_1 = arith.constant 0 : i32
    return %c0_i32, %c0_i32_0 : i32, i32
  }
  func.func @transform_5(%arg0: i32) -> (i32, i32) {
    %c0_i32 = arith.constant 0 : i32
    %c0_i32_0 = arith.constant 0 : i32
    %c0_i32_1 = arith.constant 0 : i32
    return %c0_i32, %c0_i32_0 : i32, i32
  }
  func.func @transform_6(%arg0: i32) -> (i32, i32) {
    %c0_i32 = arith.constant 0 : i32
    %c0_i32_0 = arith.constant 0 : i32
    %c0_i32_1 = arith.constant 0 : i32
    return %c0_i32, %c0_i32_0 : i32, i32
  }
  func.func @transform_7(%arg0: i32) -> (i32, i32) {
    %c0_i32 = arith.constant 0 : i32
    %c0_i32_0 = arith.constant 0 : i32
    %c0_i32_1 = arith.constant 0 : i32
    return %c0_i32, %c0_i32_0 : i32, i32
  }
}

</mosaic_0001>

<llo_original>
// kernel: tpu_custom_call.1
$region0: #{tpu_custom_call.1}
  #allocation0 [shape = 'u32[]', space=smem, size = 0x4, offset = 0x4, fixed_abs, tag = 'smem constant byte address 0x4 - core index']
  #allocation1 [shape = 'u32[144,128]{1,0:T(1,128)}', space=vmem, size = 0x12000, scoped, tag = 'internal scratch']
  %s0 = inlined_call_operand.hbm [shape: bf16[2,768], index: 0, kind: input, shape index: {}]
  %s1 = inlined_call_operand.hbm [shape: bf16[768,128], index: 1, kind: input, shape index: {}]
  %s2 = inlined_call_operand.vmem [shape: f32[1,128], index: 2, kind: input, shape index: {}]
  %s3 = inlined_call_operand.hbm [shape: bf16[128,768], index: 3, kind: input, shape index: {}]
  %s4 = inlined_call_operand.vmem [shape: f32[1,768], index: 4, kind: input, shape index: {}]
  %s5 = inlined_call_operand.hbm [shape: bf16[768,128], index: 5, kind: input, shape index: {}]
  %s6 = inlined_call_operand.vmem [shape: f32[1,128], index: 6, kind: input, shape index: {}]
  %s7 = inlined_call_operand.hbm [shape: f32[2,128], index: 7, kind: output, shape index: {}]
  %s8 = sld [smem:[#allocation0]]
  $region54: #{tpu_custom_call.1} parent=0
    _
  %s10 = ssub.s32 1, %s8
  %s11 = scalar_select 0, %s10, %s8
  $region1: #{tpu_custom_call.1} parent=0
    #allocation2 [shape = 'u8[3072]{0}', space=vmem, size = 0xc00, scoped, tag = 'input window, operand 0, single buffered']
    #allocation3 [shape = 's32[1]{0}', space=sflag, size = 0x4, scoped, tag = 'scoped memory for tpu_custom_call.1']
    #allocation4 [shape = 's32[1]{0}', space=sflag, size = 0x4, scoped, tag = 'scoped memory for tpu_custom_call.1']
    #allocation5 [shape = 'u8[196608]{0}', space=vmem, size = 0x30000, scoped, tag = 'input window, operand 1, single buffered']
    #allocation6 [shape = 's32[1]{0}', space=sflag, size = 0x4, scoped, tag = 'scoped memory for tpu_custom_call.1']
    #allocation7 [shape = 'u8[196608]{0}', space=vmem, size = 0x30000, scoped, tag = 'input window, operand 3, single buffered']
    #allocation8 [shape = 'u8[196608]{0}', space=vmem, size = 0x30000, scoped, tag = 'input window, operand 5, single buffered']
    #allocation9 [shape = 's32[1]{0}', space=sflag, size = 0x4, scoped, tag = 'scoped memory for tpu_custom_call.1']
    #allocation10 [shape = 'u8[1024]{0}', space=vmem, size = 0x400, scoped, tag = 'output window, operand 0, single buffered']
    %12 = vsyncpa [#allocation3], 0
    %13 = vsyncpa [#allocation6], 0
    %14 = vsyncpa [#allocation9], 0
    %15 = vsyncpa [#allocation4], 0
    // Predicated region
    $region2: #{tpu_custom_call.1} parent=1 // pred_check
      _
    $region3: #{tpu_custom_call.1} parent=1 // pred_check_branch
      %17 = sbr.rel (0) target = $region5
    $region4: #{tpu_custom_call.1} parent=1 // pred_region
      %s19 = ssub.s32 96, 96
      %20 = vsyncadd [#allocation3], %s19
      %s22 = sshll.u32 [#allocation2], 4
      %s23 = int_to_ptr.vmem [resolvable:$true] %s22
      %25 = dma.hbm_to_vmem [thread:$0]  %s0, 96, %s23, [#allocation3]
    $region5: #{tpu_custom_call.1} parent=1 // pred_fallthru
      _
    // Predicated region
    $region6: #{tpu_custom_call.1} parent=1 // pred_check
      _
    $region7: #{tpu_custom_call.1} parent=1 // pred_check_branch
      %27 = sbr.rel (0) target = $region9
    $region8: #{tpu_custom_call.1} parent=1 // pred_region
      %s29 = ssub.s32 6144, 6144
      %30 = vsyncadd [#allocation6], %s29
      %s31 = sshll.u32 [#allocation5], 4
      %s32 = int_to_ptr.vmem [resolvable:$true] %s31
      %37 = dma.hbm_to_vmem [thread:$0]  %s1, 6144, %s32, [#allocation6], 64, 64, 4
    $region9: #{tpu_custom_call.1} parent=1 // pred_fallthru
      _
    // Predicated region
    $region10: #{tpu_custom_call.1} parent=1 // pred_check
      _
    $region11: #{tpu_custom_call.1} parent=1 // pred_check_branch
      %39 = sbr.rel (0) target = $region13
    $region12: #{tpu_custom_call.1} parent=1 // pred_region
      _
    $region13: #{tpu_custom_call.1} parent=1 // pred_fallthru
      _
    // Predicated region
    $region14: #{tpu_custom_call.1} parent=1 // pred_check
      _
    $region15: #{tpu_custom_call.1} parent=1 // pred_check_branch
      %41 = sbr.rel (0) target = $region17
    $region16: #{tpu_custom_call.1} parent=1 // pred_region
      %s43 = ssub.s32 6144, 6144
      %44 = vsyncadd [#allocation6], %s43
      %s45 = sshll.u32 [#allocation7], 4
      %s46 = int_to_ptr.vmem [resolvable:$true] %s45
      %51 = dma.hbm_to_vmem [thread:$0]  %s3, 6144, %s46, [#allocation6], 384, 384, 24
    $region17: #{tpu_custom_call.1} parent=1 // pred_fallthru
      _
    // Predicated region
    $region18: #{tpu_custom_call.1} parent=1 // pred_check
      _
    $region19: #{tpu_custom_call.1} parent=1 // pred_check_branch
      %53 = sbr.rel (0) target = $region21
    $region20: #{tpu_custom_call.1} parent=1 // pred_region
      _
    $region21: #{tpu_custom_call.1} parent=1 // pred_fallthru
      _
    // Predicated region
    $region22: #{tpu_custom_call.1} parent=1 // pred_check
      _
    $region23: #{tpu_custom_call.1} parent=1 // pred_check_branch
      %55 = sbr.rel (0) target = $region25
    $region24: #{tpu_custom_call.1} parent=1 // pred_region
      %s57 = ssub.s32 6144, 6144
      %58 = vsyncadd [#allocation9], %s57
      %s59 = sshll.u32 [#allocation8], 4
      %s60 = int_to_ptr.vmem [resolvable:$true] %s59
      %65 = dma.hbm_to_vmem [thread:$0]  %s5, 6144, %s60, [#allocation9], 64, 64, 4
    $region25: #{tpu_custom_call.1} parent=1 // pred_fallthru
      _
    // Predicated region
    $region26: #{tpu_custom_call.1} parent=1 // pred_check
      _
    $region27: #{tpu_custom_call.1} parent=1 // pred_check_branch
      %67 = sbr.rel (0) target = $region29
    $region28: #{tpu_custom_call.1} parent=1 // pred_region
      _
    $region29: #{tpu_custom_call.1} parent=1 // pred_fallthru
      _
    // Predicated region
    $region30: #{tpu_custom_call.1} parent=1 // pred_check
      _
    $region31: #{tpu_custom_call.1} parent=1 // pred_check_branch
      %69 = sbr.rel (0) target = $region33
    $region32: #{tpu_custom_call.1} parent=1 // pred_region
      %70 = dma.done [#allocation3], 96
    $region33: #{tpu_custom_call.1} parent=1 // pred_fallthru
      _
    // Predicated region
    $region34: #{tpu_custom_call.1} parent=1 // pred_check
      _
    $region35: #{tpu_custom_call.1} parent=1 // pred_check_branch
      %72 = sbr.rel (0) target = $region37
    $region36: #{tpu_custom_call.1} parent=1 // pred_region
      %73 = dma.done [#allocation6], 6144
    $region37: #{tpu_custom_call.1} parent=1 // pred_fallthru
      _
    // Predicated region
    $region38: #{tpu_custom_call.1} parent=1 // pred_check
      _
    $region39: #{tpu_custom_call.1} parent=1 // pred_check_branch
      %75 = sbr.rel (0) target = $region41
    $region40: #{tpu_custom_call.1} parent=1 // pred_region
      %76 = dma.done [#allocation6], 6144
    $region41: #{tpu_custom_call.1} parent=1 // pred_fallthru
      _
    // Predicated region
    $region42: #{tpu_custom_call.1} parent=1 // pred_check
      _
    $region43: #{tpu_custom_call.1} parent=1 // pred_check_branch
      %78 = sbr.rel (0) target = $region45
    $region44: #{tpu_custom_call.1} parent=1 // pred_region
      %79 = dma.done [#allocation9], 6144
    $region45: #{tpu_custom_call.1} parent=1 // pred_fallthru
      _
    %v81 = vld [vmem:[#allocation2] sm:$0x3f]
    %v82 = vunpack.c.l.bf16 %v81
    %v83 = vunpack.c.h.bf16 %v81
    %v84 = vld [vmem:[#allocation5] sm:$0xf]
    %v85 = vld [vmem:[#allocation5 + $0x4] sm:$0xf]
    %v86 = vld [vmem:[#allocation5 + $0x8] sm:$0xf]
    %v87 = vld [vmem:[#allocation5 + $0xc] sm:$0xf]
    %v88 = vld [vmem:[#allocation5 + $0x10] sm:$0xf]
    %v89 = vld [vmem:[#allocation5 + $0x14] sm:$0xf]
    %v90 = vld [vmem:[#allocation5 + $0x18] sm:$0xf]
    %v91 = vld [vmem:[#allocation5 + $0x1c] sm:$0xf]
    %v92 = vld [vmem:[#allocation5 + $0x20] sm:$0xf]
    %v93 = vld [vmem:[#allocation5 + $0x24] sm:$0xf]
    %v94 = vld [vmem:[#allocation5 + $0x28] sm:$0xf]
    %v95 = vld [vmem:[#allocation5 + $0x2c] sm:$0xf]
    %v96 = vld [vmem:[#allocation5 + $0x30] sm:$0xf]
    %v97 = vld [vmem:[#allocation5 + $0x34] sm:$0xf]
    %v98 = vld [vmem:[#allocation5 + $0x38] sm:$0xf]
    %v99 = vld [vmem:[#allocation5 + $0x3c] sm:$0xf]
    %v100 = vld [vmem:[#allocation5 + $0x40] sm:$0xf]
    %v101 = vld [vmem:[#allocation5 + $0x44] sm:$0xf]
    %v102 = vld [vmem:[#allocation5 + $0x48] sm:$0xf]
    %v103 = vld [vmem:[#allocation5 + $0x4c] sm:$0xf]
    %v104 = vld [vmem:[#allocation5 + $0x50] sm:$0xf]
    %v105 = vld [vmem:[#allocation5 + $0x54] sm:$0xf]
    %v106 = vld [vmem:[#allocation5 + $0x58] sm:$0xf]
    %v107 = vld [vmem:[#allocation5 + $0x5c] sm:$0xf]
    %v108 = vld [vmem:[#allocation5 + $0x60] sm:$0xf]
    %v109 = vld [vmem:[#allocation5 + $0x64] sm:$0xf]
    %v110 = vld [vmem:[#allocation5 + $0x68] sm:$0xf]
    %v111 = vld [vmem:[#allocation5 + $0x6c] sm:$0xf]
    %v112 = vld [vmem:[#allocation5 + $0x70] sm:$0xf]
    %v113 = vld [vmem:[#allocation5 + $0x74] sm:$0xf]
    %v114 = vld [vmem:[#allocation5 + $0x78] sm:$0xf]
    %v115 = vld [vmem:[#allocation5 + $0x7c] sm:$0xf]
    %v116 = vld [vmem:[#allocation5 + $0x80] sm:$0xf]
    %v117 = vld [vmem:[#allocation5 + $0x84] sm:$0xf]
    %v118 = vld [vmem:[#allocation5 + $0x88] sm:$0xf]
    %v119 = vld [vmem:[#allocation5 + $0x8c] sm:$0xf]
    %v120 = vld [vmem:[#allocation5 + $0x90] sm:$0xf]
    %v121 = vld [vmem:[#allocation5 + $0x94] sm:$0xf]
    %v122 = vld [vmem:[#allocation5 + $0x98] sm:$0xf]
    %v123 = vld [vmem:[#allocation5 + $0x9c] sm:$0xf]
    %v124 = vld [vmem:[#allocation5 + $0xa0] sm:$0xf]
    %v125 = vld [vmem:[#allocation5 + $0xa4] sm:$0xf]
    %v126 = vld [vmem:[#allocation5 + $0xa8] sm:$0xf]
    %v127 = vld [vmem:[#allocation5 + $0xac] sm:$0xf]
    %v128 = vld [vmem:[#allocation5 + $0xb0] sm:$0xf]
    %v129 = vld [vmem:[#allocation5 + $0xb4] sm:$0xf]
    %v130 = vld [vmem:[#allocation5 + $0xb8] sm:$0xf]
    %v131 = vld [vmem:[#allocation5 + $0xbc] sm:$0xf]
    %v132 = vld [vmem:[#allocation5 + $0xc0] sm:$0xf]
    %v133 = vld [vmem:[#allocation5 + $0xc4] sm:$0xf]
    %v134 = vld [vmem:[#allocation5 + $0xc8] sm:$0xf]
    %v135 = vld [vmem:[#allocation5 + $0xcc] sm:$0xf]
    %v136 = vld [vmem:[#allocation5 + $0xd0] sm:$0xf]
    %v137 = vld [vmem:[#allocation5 + $0xd4] sm:$0xf]
    %v138 = vld [vmem:[#allocation5 + $0xd8] sm:$0xf]
    %v139 = vld [vmem:[#allocation5 + $0xdc] sm:$0xf]
    %v140 = vld [vmem:[#allocation5 + $0xe0] sm:$0xf]
    %v141 = vld [vmem:[#allocation5 + $0xe4] sm:$0xf]
    %v142 = vld [vmem:[#allocation5 + $0xe8] sm:$0xf]
    %v143 = vld [vmem:[#allocation5 + $0xec] sm:$0xf]
    %v144 = vld [vmem:[#allocation5 + $0xf0] sm:$0xf]
    %v145 = vld [vmem:[#allocation5 + $0xf4] sm:$0xf]
    %v146 = vld [vmem:[#allocation5 + $0xf8] sm:$0xf]
    %v147 = vld [vmem:[#allocation5 + $0xfc] sm:$0xf]
    %v148 = vld [vmem:[#allocation5 + $0x100] sm:$0xf]
    %v149 = vld [vmem:[#allocation5 + $0x104] sm:$0xf]
    %v150 = vld [vmem:[#allocation5 + $0x108] sm:$0xf]
    %v151 = vld [vmem:[#allocation5 + $0x10c] sm:$0xf]
    %v152 = vld [vmem:[#allocation5 + $0x110] sm:$0xf]
    %v153 = vld [vmem:[#allocation5 + $0x114] sm:$0xf]
    %v154 = vld [vmem:[#allocation5 + $0x118] sm:$0xf]
    %v155 = vld [vmem:[#allocation5 + $0x11c] sm:$0xf]
    %v156 = vld [vmem:[#allocation5 + $0x120] sm:$0xf]
    %v157 = vld [vmem:[#allocation5 + $0x124] sm:$0xf]
    %v158 = vld [vmem:[#allocation5 + $0x128] sm:$0xf]
    %v159 = vld [vmem:[#allocation5 + $0x12c] sm:$0xf]
    %v160 = vld [vmem:[#allocation5 + $0x130] sm:$0xf]
    %v161 = vld [vmem:[#allocation5 + $0x134] sm:$0xf]
    %v162 = vld [vmem:[#allocation5 + $0x138] sm:$0xf]
    %v163 = vld [vmem:[#allocation5 + $0x13c] sm:$0xf]
    %v164 = vld [vmem:[#allocation5 + $0x140] sm:$0xf]
    %v165 = vld [vmem:[#allocation5 + $0x144] sm:$0xf]
    %v166 = vld [vmem:[#allocation5 + $0x148] sm:$0xf]
    %v167 = vld [vmem:[#allocation5 + $0x14c] sm:$0xf]
    %v168 = vld [vmem:[#allocation5 + $0x150] sm:$0xf]
    %v169 = vld [vmem:[#allocation5 + $0x154] sm:$0xf]
    %v170 = vld [vmem:[#allocation5 + $0x158] sm:$0xf]
    %v171 = vld [vmem:[#allocation5 + $0x15c] sm:$0xf]
    %v172 = vld [vmem:[#allocation5 + $0x160] sm:$0xf]
    %v173 = vld [vmem:[#allocation5 + $0x164] sm:$0xf]
    %v174 = vld [vmem:[#allocation5 + $0x168] sm:$0xf]
    %v175 = vld [vmem:[#allocation5 + $0x16c] sm:$0xf]
    %v176 = vld [vmem:[#allocation5 + $0x170] sm:$0xf]
    %v177 = vld [vmem:[#allocation5 + $0x174] sm:$0xf]
    %v178 = vld [vmem:[#allocation5 + $0x178] sm:$0xf]
    %v179 = vld [vmem:[#allocation5 + $0x17c] sm:$0xf]
    %v180 = vld [vmem:[%s2] sm:$0x1]
    %v182 = vlaneseq
    %v183 = vshrl.u32 %v182, 7
    %v184 = vsub.s32 0, %v183
    %v185 = vrot.slane %v180, %v184
    %v188 = vcombine.high %v81, %v81
    %v190 = vunpack.c.l.s4 1966171168
    %v191 = vunpack.c.0.s8 %v190
    %v192 = vlaneseq
    %v193 = vshrl.u32 %v192, 7
    %v194 = vsub.s32 %v191, %v193
    %v195 = vrot.slane %v81, %v194
    %v197 = vunpack.c.l.s4 1966171168
    %v198 = vunpack.c.0.s8 %v197
    %v199 = vlaneseq
    %v200 = vshrl.u32 %v199, 7
    %v201 = vsub.s32 %v198, %v200
    %v202 = vrot.slane %v188, %v201
    %v203 = vcombine.high %v195, %v195
    %v204 = vcombine.high %v202, %v202
    %v206 = vunpack.c.l.s4 1966171168
    %v207 = vunpack.c.0.s8 %v206
    %v208 = vlaneseq
    %v209 = vshrl.u32 %v208, 7
    %v210 = vsub.s32 %v207, %v209
    %v211 = vrot.slane %v195, %v210
    %v213 = vunpack.c.l.s4 1966171168
    %v214 = vunpack.c.0.s8 %v213
    %v215 = vlaneseq
    %v216 = vshrl.u32 %v215, 7
    %v217 = vsub.s32 %v214, %v216
    %v218 = vrot.slane %v202, %v217
    %v220 = vunpack.c.l.s4 1966171168
    %v221 = vunpack.c.0.s8 %v220
    %v222 = vlaneseq
    %v223 = vshrl.u32 %v222, 7
    %v224 = vsub.s32 %v221, %v223
    %v225 = vrot.slane %v203, %v224
    %v227 = vunpack.c.l.s4 1966171168
    %v228 = vunpack.c.0.s8 %v227
    %v229 = vlaneseq
    %v230 = vshrl.u32 %v229, 7
    %v231 = vsub.s32 %v228, %v230
    %v232 = vrot.slane %v204, %v231
    %v233 = vcombine.high %v211, %v211
    %v234 = vcombine.high %v225, %v225
    %v337 = vunpack.c.l.b16 %v84
    %v338 = vunpack.c.l.b16 %v85
    %v339 = vunpack.c.l.b16 %v86
    %v340 = vunpack.c.l.b16 %v87
    %v341 = vunpack.c.l.b16 %v88
    %v342 = vunpack.c.l.b16 %v89
    %v343 = vunpack.c.l.b16 %v90
    %v344 = vunpack.c.l.b16 %v91
    %v345 = vunpack.c.l.b16 %v92
    %v346 = vunpack.c.l.b16 %v93
    %v347 = vunpack.c.l.b16 %v94
    %v348 = vunpack.c.l.b16 %v95
    %v349 = vunpack.c.l.b16 %v96
    %v350 = vunpack.c.l.b16 %v97
    %v351 = vunpack.c.l.b16 %v98
    %v352 = vunpack.c.l.b16 %v99
    %v353 = vunpack.c.l.b16 %v100
    %v354 = vunpack.c.l.b16 %v101
    %v355 = vunpack.c.l.b16 %v102
    %v356 = vunpack.c.l.b16 %v103
    %v357 = vunpack.c.l.b16 %v104
    %v358 = vunpack.c.l.b16 %v105
    %v359 = vunpack.c.l.b16 %v106
    %v360 = vunpack.c.l.b16 %v107
    %v361 = vunpack.c.l.b16 %v108
    %v362 = vunpack.c.l.b16 %v109
    %v363 = vunpack.c.l.b16 %v110
    %v364 = vunpack.c.l.b16 %v111
    %v365 = vunpack.c.l.b16 %v112
    %v366 = vunpack.c.l.b16 %v113
    %v367 = vunpack.c.l.b16 %v114
    %v368 = vunpack.c.l.b16 %v115
    %v369 = vunpack.c.l.b16 %v116
    %v370 = vunpack.c.l.b16 %v117
    %v371 = vunpack.c.l.b16 %v118
    %v372 = vunpack.c.l.b16 %v119
    %v373 = vunpack.c.l.b16 %v120
    %v374 = vunpack.c.l.b16 %v121
    %v375 = vunpack.c.l.b16 %v122
    %v376 = vunpack.c.l.b16 %v123
    %v377 = vunpack.c.l.b16 %v124
    %v378 = vunpack.c.l.b16 %v125
    %v379 = vunpack.c.l.b16 %v126
    %v380 = vunpack.c.l.b16 %v127
    %v381 = vunpack.c.l.b16 %v128
    %v382 = vunpack.c.l.b16 %v129
    %v383 = vunpack.c.l.b16 %v130
    %v384 = vunpack.c.l.b16 %v131
    %v385 = vunpack.c.l.b16 %v132
    %v386 = vunpack.c.l.b16 %v133
    %v387 = vunpack.c.l.b16 %v134
    %v388 = vunpack.c.l.b16 %v135
    %v389 = vunpack.c.l.b16 %v136
    %v390 = vunpack.c.l.b16 %v137
    %v391 = vunpack.c.l.b16 %v138
    %v392 = vunpack.c.l.b16 %v139
    %v393 = vunpack.c.l.b16 %v140
    %v394 = vunpack.c.l.b16 %v141
    %v395 = vunpack.c.l.b16 %v142
    %v396 = vunpack.c.l.b16 %v143
    %v397 = vunpack.c.l.b16 %v144
    %v398 = vunpack.c.l.b16 %v145
    %v399 = vunpack.c.l.b16 %v146
    %v400 = vunpack.c.l.b16 %v147
    %v401 = vunpack.c.l.b16 %v148
    %v402 = vunpack.c.l.b16 %v149
    %v403 = vunpack.c.l.b16 %v150
    %v404 = vunpack.c.l.b16 %v151
    %v405 = vunpack.c.l.b16 %v152
    %v406 = vunpack.c.l.b16 %v153
    %v407 = vunpack.c.l.b16 %v154
    %v408 = vunpack.c.l.b16 %v155
    %v409 = vunpack.c.l.b16 %v156
    %v410 = vunpack.c.l.b16 %v157
    %v411 = vunpack.c.l.b16 %v158
    %v412 = vunpack.c.l.b16 %v159
    %v413 = vunpack.c.l.b16 %v160
    %v414 = vunpack.c.l.b16 %v161
    %v415 = vunpack.c.l.b16 %v162
    %v416 = vunpack.c.l.b16 %v163
    %v417 = vunpack.c.l.b16 %v164
    %v418 = vunpack.c.l.b16 %v165
    %v419 = vunpack.c.l.b16 %v166
    %v420 = vunpack.c.l.b16 %v167
    %v421 = vunpack.c.l.b16 %v168
    %v422 = vunpack.c.l.b16 %v169
    %v423 = vunpack.c.l.b16 %v170
    %v424 = vunpack.c.l.b16 %v171
    %v425 = vunpack.c.l.b16 %v172
    %v426 = vunpack.c.l.b16 %v173
    %v427 = vunpack.c.l.b16 %v174
    %v428 = vunpack.c.l.b16 %v175
    %v429 = vunpack.c.l.b16 %v176
    %v430 = vunpack.c.l.b16 %v177
    %v431 = vunpack.c.l.b16 %v178
    %v432 = vunpack.c.l.b16 %v179
    %v433 = vpack.c.b16 %v338, %v337
    %v434 = vpack.c.b16 %v340, %v339
    %v435 = vpack.c.b16 %v342, %v341
    %v436 = vpack.c.b16 %v344, %v343
    %v437 = vpack.c.b16 %v346, %v345
    %v438 = vpack.c.b16 %v348, %v347
    %v439 = vpack.c.b16 %v350, %v349
    %v440 = vpack.c.b16 %v352, %v351
    %v441 = vpack.c.b16 %v354, %v353
    %v442 = vpack.c.b16 %v356, %v355
    %v443 = vpack.c.b16 %v358, %v357
    %v444 = vpack.c.b16 %v360, %v359
    %v445 = vpack.c.b16 %v362, %v361
    %v446 = vpack.c.b16 %v364, %v363
    %v447 = vpack.c.b16 %v366, %v365
    %v448 = vpack.c.b16 %v368, %v367
    %v449 = vpack.c.b16 %v370, %v369
    %v450 = vpack.c.b16 %v372, %v371
    %v451 = vpack.c.b16 %v374, %v373
    %v452 = vpack.c.b16 %v376, %v375
    %v453 = vpack.c.b16 %v378, %v377
    %v454 = vpack.c.b16 %v380, %v379
    %v455 = vpack.c.b16 %v382, %v381
    %v456 = vpack.c.b16 %v384, %v383
    %v457 = vpack.c.b16 %v386, %v385
    %v458 = vpack.c.b16 %v388, %v387
    %v459 = vpack.c.b16 %v390, %v389
    %v460 = vpack.c.b16 %v392, %v391
    %v461 = vpack.c.b16 %v394, %v393
    %v462 = vpack.c.b16 %v396, %v395
    %v463 = vpack.c.b16 %v398, %v397
    %v464 = vpack.c.b16 %v400, %v399
    %v465 = vpack.c.b16 %v402, %v401
    %v466 = vpack.c.b16 %v404, %v403
    %v467 = vpack.c.b16 %v406, %v405
    %v468 = vpack.c.b16 %v408, %v407
    %v469 = vpack.c.b16 %v410, %v409
    %v470 = vpack.c.b16 %v412, %v411
    %v471 = vpack.c.b16 %v414, %v413
    %v472 = vpack.c.b16 %v416, %v415
    %v473 = vpack.c.b16 %v418, %v417
    %v474 = vpack.c.b16 %v420, %v419
    %v475 = vpack.c.b16 %v422, %v421
    %v476 = vpack.c.b16 %v424, %v423
    %v477 = vpack.c.b16 %v426, %v425
    %v478 = vpack.c.b16 %v428, %v427
    %v479 = vpack.c.b16 %v430, %v429
    %v480 = vpack.c.b16 %v432, %v431
    %529 = vmatprep.subr.bf16.mxu0 0
    %530 = vmatpush1.bf16.msra.mxu0 %v433
    %531 = vmatprep.subr.bf16.mxu0 0
    %532 = vmatpush1.bf16.msra.mxu0 %v434
    %533 = vmatprep.subr.bf16.mxu0 0
    %534 = vmatpush1.bf16.msra.mxu0 %v435
    %535 = vmatprep.subr.bf16.mxu0 0
    %536 = vmatpush1.bf16.msra.mxu0 %v436
    %537 = vmatprep.subr.bf16.mxu0 0
    %538 = vmatpush1.bf16.msra.mxu0 %v437
    %539 = vmatprep.subr.bf16.mxu0 0
    %540 = vmatpush1.bf16.msra.mxu0 %v438
    %541 = vmatprep.subr.bf16.mxu0 0
    %542 = vmatpush1.bf16.msra.mxu0 %v439
    %543 = vmatprep.subr.bf16.mxu0 0
    %544 = vmatpush1.bf16.msra.mxu0 %v440
    %545 = vmatprep.subr.bf16.mxu0 0
    %546 = vmatpush1.bf16.msra.mxu0 %v441
    %547 = vmatprep.subr.bf16.mxu0 0
    %548 = vmatpush1.bf16.msra.mxu0 %v442
    %549 = vmatprep.subr.bf16.mxu0 0
    %550 = vmatpush1.bf16.msra.mxu0 %v443
    %551 = vmatprep.subr.bf16.mxu0 0
    %552 = vmatpush1.bf16.msra.mxu0 %v444
    %553 = vmatprep.subr.bf16.mxu0 0
    %554 = vmatpush1.bf16.msra.mxu0 %v445
    %555 = vmatprep.subr.bf16.mxu0 0
    %556 = vmatpush1.bf16.msra.mxu0 %v446
    %557 = vmatprep.subr.bf16.mxu0 0
    %558 = vmatpush1.bf16.msra.mxu0 %v447
    %559 = vmatprep.subr.bf16.mxu0 0
    %560 = vmatpush1.bf16.msra.mxu0 %v448
    %561 = vmatprep.mubr.bf16.mxu0 %v225
    %562 = vmatmul.mubr.bf16.gmra.mrb[0].mxu0 %v211
    %v563 = vpop.f32.mrb[0].mxu0
    %v564 = vadd.f32 %v185, %v563
    %v565 = vpop.f32.mrb[0].mxu0
    %v566 = vpop.f32.mrb[0].mxu0
    %v567 = vpop.f32.mrb[0].mxu0
    %568 = vdwg.mxu0
    %569 = vmatprep.subr.bf16.mxu0 0
    %570 = vmatpush1.bf16.msra.mxu0 %v449
    %571 = vmatprep.subr.bf16.mxu0 0
    %572 = vmatpush1.bf16.msra.mxu0 %v450
    %573 = vmatprep.subr.bf16.mxu0 0
    %574 = vmatpush1.bf16.msra.mxu0 %v451
    %575 = vmatprep.subr.bf16.mxu0 0
    %576 = vmatpush1.bf16.msra.mxu0 %v452
    %577 = vmatprep.subr.bf16.mxu0 0
    %578 = vmatpush1.bf16.msra.mxu0 %v453
    %579 = vmatprep.subr.bf16.mxu0 0
    %580 = vmatpush1.bf16.msra.mxu0 %v454
    %581 = vmatprep.subr.bf16.mxu0 0
    %582 = vmatpush1.bf16.msra.mxu0 %v455
    %583 = vmatprep.subr.bf16.mxu0 0
    %584 = vmatpush1.bf16.msra.mxu0 %v456
    %585 = vmatprep.subr.bf16.mxu0 0
    %586 = vmatpush1.bf16.msra.mxu0 %v457
    %587 = vmatprep.subr.bf16.mxu0 0
    %588 = vmatpush1.bf16.msra.mxu0 %v458
    %589 = vmatprep.subr.bf16.mxu0 0
    %590 = vmatpush1.bf16.msra.mxu0 %v459
    %591 = vmatprep.subr.bf16.mxu0 0
    %592 = vmatpush1.bf16.msra.mxu0 %v460
    %593 = vmatprep.subr.bf16.mxu0 0
    %594 = vmatpush1.bf16.msra.mxu0 %v461
    %595 = vmatprep.subr.bf16.mxu0 0
    %596 = vmatpush1.bf16.msra.mxu0 %v462
    %597 = vmatprep.subr.bf16.mxu0 0
    %598 = vmatpush1.bf16.msra.mxu0 %v463
    %599 = vmatprep.subr.bf16.mxu0 0
    %600 = vmatpush1.bf16.msra.mxu0 %v464
    %601 = vmatprep.mubr.bf16.mxu0 %v234
    %602 = vmatmul.mubr.bf16.gmra.mrb[0].mxu0 %v233
    %v603 = vpop.f32.mrb[0].mxu0
    %v604 = vadd.f32 %v564, %v603
    %v605 = vpop.f32.mrb[0].mxu0
    %v606 = vpop.f32.mrb[0].mxu0
    %v607 = vpop.f32.mrb[0].mxu0
    %608 = vdwg.mxu0
    %609 = vmatprep.subr.bf16.mxu0 0
    %610 = vmatpush1.bf16.msra.mxu0 %v465
    %611 = vmatprep.subr.bf16.mxu0 0
    %612 = vmatpush1.bf16.msra.mxu0 %v466
    %613 = vmatprep.subr.bf16.mxu0 0
    %614 = vmatpush1.bf16.msra.mxu0 %v467
    %615 = vmatprep.subr.bf16.mxu0 0
    %616 = vmatpush1.bf16.msra.mxu0 %v468
    %617 = vmatprep.subr.bf16.mxu0 0
    %618 = vmatpush1.bf16.msra.mxu0 %v469
    %619 = vmatprep.subr.bf16.mxu0 0
    %620 = vmatpush1.bf16.msra.mxu0 %v470
    %621 = vmatprep.subr.bf16.mxu0 0
    %622 = vmatpush1.bf16.msra.mxu0 %v471
    %623 = vmatprep.subr.bf16.mxu0 0
    %624 = vmatpush1.bf16.msra.mxu0 %v472
    %625 = vmatprep.subr.bf16.mxu0 0
    %626 = vmatpush1.bf16.msra.mxu0 %v473
    %627 = vmatprep.subr.bf16.mxu0 0
    %628 = vmatpush1.bf16.msra.mxu0 %v474
    %629 = vmatprep.subr.bf16.mxu0 0
    %630 = vmatpush1.bf16.msra.mxu0 %v475
    %631 = vmatprep.subr.bf16.mxu0 0
    %632 = vmatpush1.bf16.msra.mxu0 %v476
    %633 = vmatprep.subr.bf16.mxu0 0
    %634 = vmatpush1.bf16.msra.mxu0 %v477
    %635 = vmatprep.subr.bf16.mxu0 0
    %636 = vmatpush1.bf16.msra.mxu0 %v478
    %637 = vmatprep.subr.bf16.mxu0 0
    %638 = vmatpush1.bf16.msra.mxu0 %v479
    %639 = vmatprep.subr.bf16.mxu0 0
    %640 = vmatpush1.bf16.msra.mxu0 %v480
    %641 = vmatprep.mubr.bf16.mxu0 %v232
    %642 = vmatmul.mubr.bf16.gmra.mrb[0].mxu0 %v218
    %v643 = vpop.f32.mrb[0].mxu0
    %v644 = vadd.f32 %v604, %v643
    %v645 = vpop.f32.mrb[0].mxu0
    %v646 = vpop.f32.mrb[0].mxu0
    %v647 = vpop.f32.mrb[0].mxu0
    %648 = vdwg.mxu0
    %v649 = vmax.f32 %v644, 0.0
    %v650 = vpack.c.bf16 %v649, %v649
    %v651 = vld [vmem:[#allocation7] sm:$0xff]
    %v652 = vld [vmem:[#allocation7 + $0x8] sm:$0xff]
    %v653 = vld [vmem:[#allocation7 + $0x10] sm:$0xff]
    %v654 = vld [vmem:[#allocation7 + $0x18] sm:$0xff]
    %v655 = vld [vmem:[#allocation7 + $0x20] sm:$0xff]
    %v656 = vld [vmem:[#allocation7 + $0x28] sm:$0xff]
    %v657 = vld [vmem:[#allocation7 + $0x30] sm:$0xff]
    %v658 = vld [vmem:[#allocation7 + $0x38] sm:$0xff]
    %v659 = vld [vmem:[#allocation7 + $0x40] sm:$0xff]
    %v660 = vld [vmem:[#allocation7 + $0x48] sm:$0xff]
    %v661 = vld [vmem:[#allocation7 + $0x50] sm:$0xff]
    %v662 = vld [vmem:[#allocation7 + $0x58] sm:$0xff]
    %v663 = vld [vmem:[#allocation7 + $0x60] sm:$0xff]
    %v664 = vld [vmem:[#allocation7 + $0x68] sm:$0xff]
    %v665 = vld [vmem:[#allocation7 + $0x70] sm:$0xff]
    %v666 = vld [vmem:[#allocation7 + $0x78] sm:$0xff]
    %v667 = vld [vmem:[#allocation7 + $0x80] sm:$0xff]
    %v668 = vld [vmem:[#allocation7 + $0x88] sm:$0xff]
    %v669 = vld [vmem:[#allocation7 + $0x90] sm:$0xff]
    %v670 = vld [vmem:[#allocation7 + $0x98] sm:$0xff]
    %v671 = vld [vmem:[#allocation7 + $0xa0] sm:$0xff]
    %v672 = vld [vmem:[#allocation7 + $0xa8] sm:$0xff]
    %v673 = vld [vmem:[#allocation7 + $0xb0] sm:$0xff]
    %v674 = vld [vmem:[#allocation7 + $0xb8] sm:$0xff]
    %v675 = vld [vmem:[#allocation7 + $0xc0] sm:$0xff]
    %v676 = vld [vmem:[#allocation7 + $0xc8] sm:$0xff]
    %v677 = vld [vmem:[#allocation7 + $0xd0] sm:$0xff]
    %v678 = vld [vmem:[#allocation7 + $0xd8] sm:$0xff]
    %v679 = vld [vmem:[#allocation7 + $0xe0] sm:$0xff]
    %v680 = vld [vmem:[#allocation7 + $0xe8] sm:$0xff]
    %v681 = vld [vmem:[#allocation7 + $0xf0] sm:$0xff]
    %v682 = vld [vmem:[#allocation7 + $0xf8] sm:$0xff]
    %v683 = vld [vmem:[#allocation7 + $0x100] sm:$0xff]
    %v684 = vld [vmem:[#allocation7 + $0x108] sm:$0xff]
    %v685 = vld [vmem:[#allocation7 + $0x110] sm:$0xff]
    %v686 = vld [vmem:[#allocation7 + $0x118] sm:$0xff]
    %v687 = vld [vmem:[#allocation7 + $0x120] sm:$0xff]
    %v688 = vld [vmem:[#allocation7 + $0x128] sm:$0xff]
    %v689 = vld [vmem:[#allocation7 + $0x130] sm:$0xff]
    %v690 = vld [vmem:[#allocation7 + $0x138] sm:$0xff]
    %v691 = vld [vmem:[#allocation7 + $0x140] sm:$0xff]
    %v692 = vld [vmem:[#allocation7 + $0x148] sm:$0xff]
    %v693 = vld [vmem:[#allocation7 + $0x150] sm:$0xff]
    %v694 = vld [vmem:[#allocation7 + $0x158] sm:$0xff]
    %v695 = vld [vmem:[#allocation7 + $0x160] sm:$0xff]
    %v696 = vld [vmem:[#allocation7 + $0x168] sm:$0xff]
    %v697 = vld [vmem:[#allocation7 + $0x170] sm:$0xff]
    %v698 = vld [vmem:[#allocation7 + $0x178] sm:$0xff]
    %v699 = vld [vmem:[%s4] sm:$0x3f]
    %v701 = vlaneseq
    %v702 = vshrl.u32 %v701, 7
    %v703 = vsub.s32 0, %v702
    %v704 = vrot.slane %v699, %v703
    %v705 = vlaneseq
    %v706 = vshrl.u32 %v705, 7
    %v707 = vsub.s32 1, %v706
    %v708 = vrot.slane %v699, %v707
    %v709 = vlaneseq
    %v710 = vshrl.u32 %v709, 7
    %v711 = vsub.s32 2, %v710
    %v712 = vrot.slane %v699, %v711
    %v713 = vlaneseq
    %v714 = vshrl.u32 %v713, 7
    %v715 = vsub.s32 3, %v714
    %v716 = vrot.slane %v699, %v715
    %v717 = vlaneseq
    %v718 = vshrl.u32 %v717, 7
    %v719 = vsub.s32 4, %v718
    %v720 = vrot.slane %v699, %v719
    %v721 = vlaneseq
    %v722 = vshrl.u32 %v721, 7
    %v723 = vsub.s32 5, %v722
    %v724 = vrot.slane %v699, %v723
    %v779 = vunpack.c.l.b16 %v651
    %v780 = vunpack.c.h.b16 %v651
    %v781 = vunpack.c.l.b16 %v652
    %v782 = vunpack.c.h.b16 %v652
    %v783 = vunpack.c.l.b16 %v653
    %v784 = vunpack.c.h.b16 %v653
    %v785 = vunpack.c.l.b16 %v654
    %v786 = vunpack.c.h.b16 %v654
    %v787 = vunpack.c.l.b16 %v655
    %v788 = vunpack.c.h.b16 %v655
    %v789 = vunpack.c.l.b16 %v656
    %v790 = vunpack.c.h.b16 %v656
    %v791 = vunpack.c.l.b16 %v657
    %v792 = vunpack.c.h.b16 %v657
    %v793 = vunpack.c.l.b16 %v658
    %v794 = vunpack.c.h.b16 %v658
    %v795 = vunpack.c.l.b16 %v659
    %v796 = vunpack.c.h.b16 %v659
    %v797 = vunpack.c.l.b16 %v660
    %v798 = vunpack.c.h.b16 %v660
    %v799 = vunpack.c.l.b16 %v661
    %v800 = vunpack.c.h.b16 %v661
    %v801 = vunpack.c.l.b16 %v662
    %v802 = vunpack.c.h.b16 %v662
    %v803 = vunpack.c.l.b16 %v663
    %v804 = vunpack.c.h.b16 %v663
    %v805 = vunpack.c.l.b16 %v664
    %v806 = vunpack.c.h.b16 %v664
    %v807 = vunpack.c.l.b16 %v665
    %v808 = vunpack.c.h.b16 %v665
    %v809 = vunpack.c.l.b16 %v666
    %v810 = vunpack.c.h.b16 %v666
    %v811 = vunpack.c.l.b16 %v667
    %v812 = vunpack.c.h.b16 %v667
    %v813 = vunpack.c.l.b16 %v668
    %v814 = vunpack.c.h.b16 %v668
    %v815 = vunpack.c.l.b16 %v669
    %v816 = vunpack.c.h.b16 %v669
    %v817 = vunpack.c.l.b16 %v670
    %v818 = vunpack.c.h.b16 %v670
    %v819 = vunpack.c.l.b16 %v671
    %v820 = vunpack.c.h.b16 %v671
    %v821 = vunpack.c.l.b16 %v672
    %v822 = vunpack.c.h.b16 %v672
    %v823 = vunpack.c.l.b16 %v673
    %v824 = vunpack.c.h.b16 %v673
    %v825 = vunpack.c.l.b16 %v674
    %v826 = vunpack.c.h.b16 %v674
    %v827 = vunpack.c.l.b16 %v675
    %v828 = vunpack.c.h.b16 %v675
    %v829 = vunpack.c.l.b16 %v676
    %v830 = vunpack.c.h.b16 %v676
    %v831 = vunpack.c.l.b16 %v677
    %v832 = vunpack.c.h.b16 %v677
    %v833 = vunpack.c.l.b16 %v678
    %v834 = vunpack.c.h.b16 %v678
    %v835 = vunpack.c.l.b16 %v679
    %v836 = vunpack.c.h.b16 %v679
    %v837 = vunpack.c.l.b16 %v680
    %v838 = vunpack.c.h.b16 %v680
    %v839 = vunpack.c.l.b16 %v681
    %v840 = vunpack.c.h.b16 %v681
    %v841 = vunpack.c.l.b16 %v682
    %v842 = vunpack.c.h.b16 %v682
    %v843 = vunpack.c.l.b16 %v683
    %v844 = vunpack.c.h.b16 %v683
    %v845 = vunpack.c.l.b16 %v684
    %v846 = vunpack.c.h.b16 %v684
    %v847 = vunpack.c.l.b16 %v685
    %v848 = vunpack.c.h.b16 %v685
    %v849 = vunpack.c.l.b16 %v686
    %v850 = vunpack.c.h.b16 %v686
    %v851 = vunpack.c.l.b16 %v687
    %v852 = vunpack.c.h.b16 %v687
    %v853 = vunpack.c.l.b16 %v688
    %v854 = vunpack.c.h.b16 %v688
    %v855 = vunpack.c.l.b16 %v689
    %v856 = vunpack.c.h.b16 %v689
    %v857 = vunpack.c.l.b16 %v690
    %v858 = vunpack.c.h.b16 %v690
    %v859 = vunpack.c.l.b16 %v691
    %v860 = vunpack.c.h.b16 %v691
    %v861 = vunpack.c.l.b16 %v692
    %v862 = vunpack.c.h.b16 %v692
    %v863 = vunpack.c.l.b16 %v693
    %v864 = vunpack.c.h.b16 %v693
    %v865 = vunpack.c.l.b16 %v694
    %v866 = vunpack.c.h.b16 %v694
    %v867 = vunpack.c.l.b16 %v695
    %v868 = vunpack.c.h.b16 %v695
    %v869 = vunpack.c.l.b16 %v696
    %v870 = vunpack.c.h.b16 %v696
    %v871 = vunpack.c.l.b16 %v697
    %v872 = vunpack.c.h.b16 %v697
    %v873 = vunpack.c.l.b16 %v698
    %v874 = vunpack.c.h.b16 %v698
    %v875 = vpack.c.b16 %v785, %v779
    %v876 = vpack.c.b16 %v786, %v780
    %v877 = vpack.c.b16 %v787, %v781
    %v878 = vpack.c.b16 %v788, %v782
    %v879 = vpack.c.b16 %v789, %v783
    %v880 = vpack.c.b16 %v790, %v784
    %v881 = vpack.c.b16 %v797, %v791
    %v882 = vpack.c.b16 %v798, %v792
    %v883 = vpack.c.b16 %v799, %v793
    %v884 = vpack.c.b16 %v800, %v794
    %v885 = vpack.c.b16 %v801, %v795
    %v886 = vpack.c.b16 %v802, %v796
    %v887 = vpack.c.b16 %v809, %v803
    %v888 = vpack.c.b16 %v810, %v804
    %v889 = vpack.c.b16 %v811, %v805
    %v890 = vpack.c.b16 %v812, %v806
    %v891 = vpack.c.b16 %v813, %v807
    %v892 = vpack.c.b16 %v814, %v808
    %v893 = vpack.c.b16 %v821, %v815
    %v894 = vpack.c.b16 %v822, %v816
    %v895 = vpack.c.b16 %v823, %v817
    %v896 = vpack.c.b16 %v824, %v818
    %v897 = vpack.c.b16 %v825, %v819
    %v898 = vpack.c.b16 %v826, %v820
    %v899 = vpack.c.b16 %v833, %v827
    %v900 = vpack.c.b16 %v834, %v828
    %v901 = vpack.c.b16 %v835, %v829
    %v902 = vpack.c.b16 %v836, %v830
    %v903 = vpack.c.b16 %v837, %v831
    %v904 = vpack.c.b16 %v838, %v832
    %v905 = vpack.c.b16 %v845, %v839
    %v906 = vpack.c.b16 %v846, %v840
    %v907 = vpack.c.b16 %v847, %v841
    %v908 = vpack.c.b16 %v848, %v842
    %v909 = vpack.c.b16 %v849, %v843
    %v910 = vpack.c.b16 %v850, %v844
    %v911 = vpack.c.b16 %v857, %v851
    %v912 = vpack.c.b16 %v858, %v852
    %v913 = vpack.c.b16 %v859, %v853
    %v914 = vpack.c.b16 %v860, %v854
    %v915 = vpack.c.b16 %v861, %v855
    %v916 = vpack.c.b16 %v862, %v856
    %v917 = vpack.c.b16 %v869, %v863
    %v918 = vpack.c.b16 %v870, %v864
    %v919 = vpack.c.b16 %v871, %v865
    %v920 = vpack.c.b16 %v872, %v866
    %v921 = vpack.c.b16 %v873, %v867
    %v922 = vpack.c.b16 %v874, %v868
    %971 = vmatprep.subr.bf16.mxu0 %v876
    %972 = vmatpush1.bf16.msra.mxu0 %v875
    %973 = vmatprep.subr.bf16.mxu0 %v882
    %974 = vmatpush1.bf16.msra.mxu0 %v881
    %975 = vmatprep.subr.bf16.mxu0 %v888
    %976 = vmatpush1.bf16.msra.mxu0 %v887
    %977 = vmatprep.subr.bf16.mxu0 %v894
    %978 = vmatpush1.bf16.msra.mxu0 %v893
    %979 = vmatprep.subr.bf16.mxu0 %v900
    %980 = vmatpush1.bf16.msra.mxu0 %v899
    %981 = vmatprep.subr.bf16.mxu0 %v906
    %982 = vmatpush1.bf16.msra.mxu0 %v905
    %983 = vmatprep.subr.bf16.mxu0 %v912
    %984 = vmatpush1.bf16.msra.mxu0 %v911
    %985 = vmatprep.subr.bf16.mxu0 %v918
    %986 = vmatpush1.bf16.msra.mxu0 %v917
    %987 = vmatprep.subr.bf16.mxu0 0
    %988 = vmatpush1.bf16.msra.mxu0 0
    %989 = vmatprep.subr.bf16.mxu0 0
    %990 = vmatpush1.bf16.msra.mxu0 0
    %991 = vmatprep.subr.bf16.mxu0 0
    %992 = vmatpush1.bf16.msra.mxu0 0
    %993 = vmatprep.subr.bf16.mxu0 0
    %994 = vmatpush1.bf16.msra.mxu0 0
    %995 = vmatprep.subr.bf16.mxu0 0
    %996 = vmatpush1.bf16.msra.mxu0 0
    %997 = vmatprep.subr.bf16.mxu0 0
    %998 = vmatpush1.bf16.msra.mxu0 0
    %999 = vmatprep.subr.bf16.mxu0 0
    %1000 = vmatpush1.bf16.msra.mxu0 0
    %1001 = vmatprep.subr.bf16.mxu0 0
    %1002 = vmatpush1.bf16.msra.mxu0 0
    %1003 = vmatprep.mubr.bf16.mxu0 0
    %1004 = vmatmul.mubr.bf16.gmra.mrb[0].mxu0 %v650
    %v1005 = vpop.f32.mrb[0].mxu0
    %v1006 = vadd.f32 %v704, %v1005
    %v1007 = vpop.f32.mrb[0].mxu0
    %v1008 = vadd.f32 %v708, %v1007
    %v1009 = vpop.f32.mrb[0].mxu0
    %v1010 = vpop.f32.mrb[0].mxu0
    %1011 = vdwg.mxu0
    %1012 = vmatprep.subr.bf16.mxu0 %v878
    %1013 = vmatpush1.bf16.msra.mxu0 %v877
    %1014 = vmatprep.subr.bf16.mxu0 %v884
    %1015 = vmatpush1.bf16.msra.mxu0 %v883
    %1016 = vmatprep.subr.bf16.mxu0 %v890
    %1017 = vmatpush1.bf16.msra.mxu0 %v889
    %1018 = vmatprep.subr.bf16.mxu0 %v896
    %1019 = vmatpush1.bf16.msra.mxu0 %v895
    %1020 = vmatprep.subr.bf16.mxu0 %v902
    %1021 = vmatpush1.bf16.msra.mxu0 %v901
    %1022 = vmatprep.subr.bf16.mxu0 %v908
    %1023 = vmatpush1.bf16.msra.mxu0 %v907
    %1024 = vmatprep.subr.bf16.mxu0 %v914
    %1025 = vmatpush1.bf16.msra.mxu0 %v913
    %1026 = vmatprep.subr.bf16.mxu0 %v920
    %1027 = vmatpush1.bf16.msra.mxu0 %v919
    %1028 = vmatprep.subr.bf16.mxu0 0
    %1029 = vmatpush1.bf16.msra.mxu0 0
    %1030 = vmatprep.subr.bf16.mxu0 0
    %1031 = vmatpush1.bf16.msra.mxu0 0
    %1032 = vmatprep.subr.bf16.mxu0 0
    %1033 = vmatpush1.bf16.msra.mxu0 0
    %1034 = vmatprep.subr.bf16.mxu0 0
    %1035 = vmatpush1.bf16.msra.mxu0 0
    %1036 = vmatprep.subr.bf16.mxu0 0
    %1037 = vmatpush1.bf16.msra.mxu0 0
    %1038 = vmatprep.subr.bf16.mxu0 0
    %1039 = vmatpush1.bf16.msra.mxu0 0
    %1040 = vmatprep.subr.bf16.mxu0 0
    %1041 = vmatpush1.bf16.msra.mxu0 0
    %1042 = vmatprep.subr.bf16.mxu0 0
    %1043 = vmatpush1.bf16.msra.mxu0 0
    %1044 = vmatprep.mubr.bf16.mxu0 0
    %1045 = vmatmul.mubr.bf16.gmra.mrb[0].mxu0 %v650
    %v1046 = vpop.f32.mrb[0].mxu0
    %v1047 = vadd.f32 %v712, %v1046
    %v1048 = vpop.f32.mrb[0].mxu0
    %v1049 = vadd.f32 %v716, %v1048
    %v1050 = vpop.f32.mrb[0].mxu0
    %v1051 = vpop.f32.mrb[0].mxu0
    %1052 = vdwg.mxu0
    %1053 = vmatprep.subr.bf16.mxu0 %v880
    %1054 = vmatpush1.bf16.msra.mxu0 %v879
    %1055 = vmatprep.subr.bf16.mxu0 %v886
    %1056 = vmatpush1.bf16.msra.mxu0 %v885
    %1057 = vmatprep.subr.bf16.mxu0 %v892
    %1058 = vmatpush1.bf16.msra.mxu0 %v891
    %1059 = vmatprep.subr.bf16.mxu0 %v898
    %1060 = vmatpush1.bf16.msra.mxu0 %v897
    %1061 = vmatprep.subr.bf16.mxu0 %v904
    %1062 = vmatpush1.bf16.msra.mxu0 %v903
    %1063 = vmatprep.subr.bf16.mxu0 %v910
    %1064 = vmatpush1.bf16.msra.mxu0 %v909
    %1065 = vmatprep.subr.bf16.mxu0 %v916
    %1066 = vmatpush1.bf16.msra.mxu0 %v915
    %1067 = vmatprep.subr.bf16.mxu0 %v922
    %1068 = vmatpush1.bf16.msra.mxu0 %v921
    %1069 = vmatprep.subr.bf16.mxu0 0
    %1070 = vmatpush1.bf16.msra.mxu0 0
    %1071 = vmatprep.subr.bf16.mxu0 0
    %1072 = vmatpush1.bf16.msra.mxu0 0
    %1073 = vmatprep.subr.bf16.mxu0 0
    %1074 = vmatpush1.bf16.msra.mxu0 0
    %1075 = vmatprep.subr.bf16.mxu0 0
    %1076 = vmatpush1.bf16.msra.mxu0 0
    %1077 = vmatprep.subr.bf16.mxu0 0
    %1078 = vmatpush1.bf16.msra.mxu0 0
    %1079 = vmatprep.subr.bf16.mxu0 0
    %1080 = vmatpush1.bf16.msra.mxu0 0
    %1081 = vmatprep.subr.bf16.mxu0 0
    %1082 = vmatpush1.bf16.msra.mxu0 0
    %1083 = vmatprep.subr.bf16.mxu0 0
    %1084 = vmatpush1.bf16.msra.mxu0 0
    %1085 = vmatprep.mubr.bf16.mxu0 0
    %1086 = vmatmul.mubr.bf16.gmra.mrb[0].mxu0 %v650
    %v1087 = vpop.f32.mrb[0].mxu0
    %v1088 = vadd.f32 %v720, %v1087
    %v1089 = vpop.f32.mrb[0].mxu0
    %v1090 = vadd.f32 %v724, %v1089
    %v1091 = vpop.f32.mrb[0].mxu0
    %v1092 = vpop.f32.mrb[0].mxu0
    %1093 = vdwg.mxu0
    %v1100 = vcombine.low %v1006, %v1008
    %v1101 = vcombine.low %v1047, %v1049
    %v1103 = vunpack.c.l.s4 1983009808
    %v1104 = vunpack.c.0.s8 %v1103
    %v1105 = vlaneseq
    %v1106 = vshrl.u32 %v1105, 7
    %v1107 = vsub.s32 %v1104, %v1106
    %v1108 = vrot.slane %v1100, %v1107
    %v1110 = vunpack.c.l.s4 1983009808
    %v1111 = vunpack.c.0.s8 %v1110
    %v1112 = vlaneseq
    %v1113 = vshrl.u32 %v1112, 7
    %v1114 = vsub.s32 %v1111, %v1113
    %v1115 = vrot.slane %v1101, %v1114
    %v1116 = vcombine.low %v1108, %v1115
    %v1117 = vcombine.low %v1088, %v1090
    %v1119 = vunpack.c.l.s4 1983009808
    %v1120 = vunpack.c.0.s8 %v1119
    %v1121 = vlaneseq
    %v1122 = vshrl.u32 %v1121, 7
    %v1123 = vsub.s32 %v1120, %v1122
    %v1124 = vrot.slane %v1117, %v1123
    %v1127 = vadd.f32 %v82, %v1116
    %v1128 = vadd.f32 %v83, %v1124
    %v1131 = vcombine.high %v1127, %v1127
    %v1133 = vunpack.c.l.s4 1983009808
    %v1134 = vunpack.c.0.s8 %v1133
    %v1135 = vlaneseq
    %v1136 = vshrl.u32 %v1135, 7
    %v1137 = vsub.s32 %v1134, %v1136
    %v1138 = vrot.slane %v1127, %v1137
    %v1140 = vunpack.c.l.s4 1983009808
    %v1141 = vunpack.c.0.s8 %v1140
    %v1142 = vlaneseq
    %v1143 = vshrl.u32 %v1142, 7
    %v1144 = vsub.s32 %v1141, %v1143
    %v1145 = vrot.slane %v1131, %v1144
    %v1146 = vcombine.high %v1138, %v1138
    %v1147 = vcombine.high %v1145, %v1145
    %v1149 = vunpack.c.l.s4 1983009808
    %v1150 = vunpack.c.0.s8 %v1149
    %v1151 = vlaneseq
    %v1152 = vshrl.u32 %v1151, 7
    %v1153 = vsub.s32 %v1150, %v1152
    %v1154 = vrot.slane %v1128, %v1153
    %v1155 = vcombine.high %v1154, %v1154
    %v1162 = vpack.c.bf16 %v1138, %v1138
    %v1163 = vpack.c.bf16 %v1146, %v1146
    %v1164 = vpack.c.bf16 %v1145, %v1145
    %v1165 = vpack.c.bf16 %v1147, %v1147
    %v1166 = vpack.c.bf16 %v1154, %v1154
    %v1167 = vpack.c.bf16 %v1155, %v1155
    %v1168 = vld [vmem:[#allocation8] sm:$0xf]
    %v1169 = vld [vmem:[#allocation8 + $0x4] sm:$0xf]
    %v1170 = vld [vmem:[#allocation8 + $0x8] sm:$0xf]
    %v1171 = vld [vmem:[#allocation8 + $0xc] sm:$0xf]
    %v1172 = vld [vmem:[#allocation8 + $0x10] sm:$0xf]
    %v1173 = vld [vmem:[#allocation8 + $0x14] sm:$0xf]
    %v1174 = vld [vmem:[#allocation8 + $0x18] sm:$0xf]
    %v1175 = vld [vmem:[#allocation8 + $0x1c] sm:$0xf]
    %v1176 = vld [vmem:[#allocation8 + $0x20] sm:$0xf]
    %v1177 = vld [vmem:[#allocation8 + $0x24] sm:$0xf]
    %v1178 = vld [vmem:[#allocation8 + $0x28] sm:$0xf]
    %v1179 = vld [vmem:[#allocation8 + $0x2c] sm:$0xf]
    %v1180 = vld [vmem:[#allocation8 + $0x30] sm:$0xf]
    %v1181 = vld [vmem:[#allocation8 + $0x34] sm:$0xf]
    %v1182 = vld [vmem:[#allocation8 + $0x38] sm:$0xf]
    %v1183 = vld [vmem:[#allocation8 + $0x3c] sm:$0xf]
    %v1184 = vld [vmem:[#allocation8 + $0x40] sm:$0xf]
    %v1185 = vld [vmem:[#allocation8 + $0x44] sm:$0xf]
    %v1186 = vld [vmem:[#allocation8 + $0x48] sm:$0xf]
    %v1187 = vld [vmem:[#allocation8 + $0x4c] sm:$0xf]
    %v1188 = vld [vmem:[#allocation8 + $0x50] sm:$0xf]
    %v1189 = vld [vmem:[#allocation8 + $0x54] sm:$0xf]
    %v1190 = vld [vmem:[#allocation8 + $0x58] sm:$0xf]
    %v1191 = vld [vmem:[#allocation8 + $0x5c] sm:$0xf]
    %v1192 = vld [vmem:[#allocation8 + $0x60] sm:$0xf]
    %v1193 = vld [vmem:[#allocation8 + $0x64] sm:$0xf]
    %v1194 = vld [vmem:[#allocation8 + $0x68] sm:$0xf]
    %v1195 = vld [vmem:[#allocation8 + $0x6c] sm:$0xf]
    %v1196 = vld [vmem:[#allocation8 + $0x70] sm:$0xf]
    %v1197 = vld [vmem:[#allocation8 + $0x74] sm:$0xf]
    %v1198 = vld [vmem:[#allocation8 + $0x78] sm:$0xf]
    %v1199 = vld [vmem:[#allocation8 + $0x7c] sm:$0xf]
    %v1200 = vld [vmem:[#allocation8 + $0x80] sm:$0xf]
    %v1201 = vld [vmem:[#allocation8 + $0x84] sm:$0xf]
    %v1202 = vld [vmem:[#allocation8 + $0x88] sm:$0xf]
    %v1203 = vld [vmem:[#allocation8 + $0x8c] sm:$0xf]
    %v1204 = vld [vmem:[#allocation8 + $0x90] sm:$0xf]
    %v1205 = vld [vmem:[#allocation8 + $0x94] sm:$0xf]
    %v1206 = vld [vmem:[#allocation8 + $0x98] sm:$0xf]
    %v1207 = vld [vmem:[#allocation8 + $0x9c] sm:$0xf]
    %v1208 = vld [vmem:[#allocation8 + $0xa0] sm:$0xf]
    %v1209 = vld [vmem:[#allocation8 + $0xa4] sm:$0xf]
    %v1210 = vld [vmem:[#allocation8 + $0xa8] sm:$0xf]
    %v1211 = vld [vmem:[#allocation8 + $0xac] sm:$0xf]
    %v1212 = vld [vmem:[#allocation8 + $0xb0] sm:$0xf]
    %v1213 = vld [vmem:[#allocation8 + $0xb4] sm:$0xf]
    %v1214 = vld [vmem:[#allocation8 + $0xb8] sm:$0xf]
    %v1215 = vld [vmem:[#allocation8 + $0xbc] sm:$0xf]
    %v1216 = vld [vmem:[#allocation8 + $0xc0] sm:$0xf]
    %v1217 = vld [vmem:[#allocation8 + $0xc4] sm:$0xf]
    %v1218 = vld [vmem:[#allocation8 + $0xc8] sm:$0xf]
    %v1219 = vld [vmem:[#allocation8 + $0xcc] sm:$0xf]
    %v1220 = vld [vmem:[#allocation8 + $0xd0] sm:$0xf]
    %v1221 = vld [vmem:[#allocation8 + $0xd4] sm:$0xf]
    %v1222 = vld [vmem:[#allocation8 + $0xd8] sm:$0xf]
    %v1223 = vld [vmem:[#allocation8 + $0xdc] sm:$0xf]
    %v1224 = vld [vmem:[#allocation8 + $0xe0] sm:$0xf]
    %v1225 = vld [vmem:[#allocation8 + $0xe4] sm:$0xf]
    %v1226 = vld [vmem:[#allocation8 + $0xe8] sm:$0xf]
    %v1227 = vld [vmem:[#allocation8 + $0xec] sm:$0xf]
    %v1228 = vld [vmem:[#allocation8 + $0xf0] sm:$0xf]
    %v1229 = vld [vmem:[#allocation8 + $0xf4] sm:$0xf]
    %v1230 = vld [vmem:[#allocation8 + $0xf8] sm:$0xf]
    %v1231 = vld [vmem:[#allocation8 + $0xfc] sm:$0xf]
    %v1232 = vld [vmem:[#allocation8 + $0x100] sm:$0xf]
    %v1233 = vld [vmem:[#allocation8 + $0x104] sm:$0xf]
    %v1234 = vld [vmem:[#allocation8 + $0x108] sm:$0xf]
    %v1235 = vld [vmem:[#allocation8 + $0x10c] sm:$0xf]
    %v1236 = vld [vmem:[#allocation8 + $0x110] sm:$0xf]
    %v1237 = vld [vmem:[#allocation8 + $0x114] sm:$0xf]
    %v1238 = vld [vmem:[#allocation8 + $0x118] sm:$0xf]
    %v1239 = vld [vmem:[#allocation8 + $0x11c] sm:$0xf]
    %v1240 = vld [vmem:[#allocation8 + $0x120] sm:$0xf]
    %v1241 = vld [vmem:[#allocation8 + $0x124] sm:$0xf]
    %v1242 = vld [vmem:[#allocation8 + $0x128] sm:$0xf]
    %v1243 = vld [vmem:[#allocation8 + $0x12c] sm:$0xf]
    %v1244 = vld [vmem:[#allocation8 + $0x130] sm:$0xf]
    %v1245 = vld [vmem:[#allocation8 + $0x134] sm:$0xf]
    %v1246 = vld [vmem:[#allocation8 + $0x138] sm:$0xf]
    %v1247 = vld [vmem:[#allocation8 + $0x13c] sm:$0xf]
    %v1248 = vld [vmem:[#allocation8 + $0x140] sm:$0xf]
    %v1249 = vld [vmem:[#allocation8 + $0x144] sm:$0xf]
    %v1250 = vld [vmem:[#allocation8 + $0x148] sm:$0xf]
    %v1251 = vld [vmem:[#allocation8 + $0x14c] sm:$0xf]
    %v1252 = vld [vmem:[#allocation8 + $0x150] sm:$0xf]
    %v1253 = vld [vmem:[#allocation8 + $0x154] sm:$0xf]
    %v1254 = vld [vmem:[#allocation8 + $0x158] sm:$0xf]
    %v1255 = vld [vmem:[#allocation8 + $0x15c] sm:$0xf]
    %v1256 = vld [vmem:[#allocation8 + $0x160] sm:$0xf]
    %v1257 = vld [vmem:[#allocation8 + $0x164] sm:$0xf]
    %v1258 = vld [vmem:[#allocation8 + $0x168] sm:$0xf]
    %v1259 = vld [vmem:[#allocation8 + $0x16c] sm:$0xf]
    %v1260 = vld [vmem:[#allocation8 + $0x170] sm:$0xf]
    %v1261 = vld [vmem:[#allocation8 + $0x174] sm:$0xf]
    %v1262 = vld [vmem:[#allocation8 + $0x178] sm:$0xf]
    %v1263 = vld [vmem:[#allocation8 + $0x17c] sm:$0xf]
    %v1264 = vld [vmem:[%s6] sm:$0x1]
    %v1266 = vlaneseq
    %v1267 = vshrl.u32 %v1266, 7
    %v1268 = vsub.s32 0, %v1267
    %v1269 = vrot.slane %v1264, %v1268
    %v1367 = vunpack.c.l.b16 %v1168
    %v1368 = vunpack.c.l.b16 %v1169
    %v1369 = vunpack.c.l.b16 %v1170
    %v1370 = vunpack.c.l.b16 %v1171
    %v1371 = vunpack.c.l.b16 %v1172
    %v1372 = vunpack.c.l.b16 %v1173
    %v1373 = vunpack.c.l.b16 %v1174
    %v1374 = vunpack.c.l.b16 %v1175
    %v1375 = vunpack.c.l.b16 %v1176
    %v1376 = vunpack.c.l.b16 %v1177
    %v1377 = vunpack.c.l.b16 %v1178
    %v1378 = vunpack.c.l.b16 %v1179
    %v1379 = vunpack.c.l.b16 %v1180
    %v1380 = vunpack.c.l.b16 %v1181
    %v1381 = vunpack.c.l.b16 %v1182
    %v1382 = vunpack.c.l.b16 %v1183
    %v1383 = vunpack.c.l.b16 %v1184
    %v1384 = vunpack.c.l.b16 %v1185
    %v1385 = vunpack.c.l.b16 %v1186
    %v1386 = vunpack.c.l.b16 %v1187
    %v1387 = vunpack.c.l.b16 %v1188
    %v1388 = vunpack.c.l.b16 %v1189
    %v1389 = vunpack.c.l.b16 %v1190
    %v1390 = vunpack.c.l.b16 %v1191
    %v1391 = vunpack.c.l.b16 %v1192
    %v1392 = vunpack.c.l.b16 %v1193
    %v1393 = vunpack.c.l.b16 %v1194
    %v1394 = vunpack.c.l.b16 %v1195
    %v1395 = vunpack.c.l.b16 %v1196
    %v1396 = vunpack.c.l.b16 %v1197
    %v1397 = vunpack.c.l.b16 %v1198
    %v1398 = vunpack.c.l.b16 %v1199
    %v1399 = vunpack.c.l.b16 %v1200
    %v1400 = vunpack.c.l.b16 %v1201
    %v1401 = vunpack.c.l.b16 %v1202
    %v1402 = vunpack.c.l.b16 %v1203
    %v1403 = vunpack.c.l.b16 %v1204
    %v1404 = vunpack.c.l.b16 %v1205
    %v1405 = vunpack.c.l.b16 %v1206
    %v1406 = vunpack.c.l.b16 %v1207
    %v1407 = vunpack.c.l.b16 %v1208
    %v1408 = vunpack.c.l.b16 %v1209
    %v1409 = vunpack.c.l.b16 %v1210
    %v1410 = vunpack.c.l.b16 %v1211
    %v1411 = vunpack.c.l.b16 %v1212
    %v1412 = vunpack.c.l.b16 %v1213
    %v1413 = vunpack.c.l.b16 %v1214
    %v1414 = vunpack.c.l.b16 %v1215
    %v1415 = vunpack.c.l.b16 %v1216
    %v1416 = vunpack.c.l.b16 %v1217
    %v1417 = vunpack.c.l.b16 %v1218
    %v1418 = vunpack.c.l.b16 %v1219
    %v1419 = vunpack.c.l.b16 %v1220
    %v1420 = vunpack.c.l.b16 %v1221
    %v1421 = vunpack.c.l.b16 %v1222
    %v1422 = vunpack.c.l.b16 %v1223
    %v1423 = vunpack.c.l.b16 %v1224
    %v1424 = vunpack.c.l.b16 %v1225
    %v1425 = vunpack.c.l.b16 %v1226
    %v1426 = vunpack.c.l.b16 %v1227
    %v1427 = vunpack.c.l.b16 %v1228
    %v1428 = vunpack.c.l.b16 %v1229
    %v1429 = vunpack.c.l.b16 %v1230
    %v1430 = vunpack.c.l.b16 %v1231
    %v1431 = vunpack.c.l.b16 %v1232
    %v1432 = vunpack.c.l.b16 %v1233
    %v1433 = vunpack.c.l.b16 %v1234
    %v1434 = vunpack.c.l.b16 %v1235
    %v1435 = vunpack.c.l.b16 %v1236
    %v1436 = vunpack.c.l.b16 %v1237
    %v1437 = vunpack.c.l.b16 %v1238
    %v1438 = vunpack.c.l.b16 %v1239
    %v1439 = vunpack.c.l.b16 %v1240
    %v1440 = vunpack.c.l.b16 %v1241
    %v1441 = vunpack.c.l.b16 %v1242
    %v1442 = vunpack.c.l.b16 %v1243
    %v1443 = vunpack.c.l.b16 %v1244
    %v1444 = vunpack.c.l.b16 %v1245
    %v1445 = vunpack.c.l.b16 %v1246
    %v1446 = vunpack.c.l.b16 %v1247
    %v1447 = vunpack.c.l.b16 %v1248
    %v1448 = vunpack.c.l.b16 %v1249
    %v1449 = vunpack.c.l.b16 %v1250
    %v1450 = vunpack.c.l.b16 %v1251
    %v1451 = vunpack.c.l.b16 %v1252
    %v1452 = vunpack.c.l.b16 %v1253
    %v1453 = vunpack.c.l.b16 %v1254
    %v1454 = vunpack.c.l.b16 %v1255
    %v1455 = vunpack.c.l.b16 %v1256
    %v1456 = vunpack.c.l.b16 %v1257
    %v1457 = vunpack.c.l.b16 %v1258
    %v1458 = vunpack.c.l.b16 %v1259
    %v1459 = vunpack.c.l.b16 %v1260
    %v1460 = vunpack.c.l.b16 %v1261
    %v1461 = vunpack.c.l.b16 %v1262
    %v1462 = vunpack.c.l.b16 %v1263
    %v1463 = vpack.c.b16 %v1368, %v1367
    %v1464 = vpack.c.b16 %v1370, %v1369
    %v1465 = vpack.c.b16 %v1372, %v1371
    %v1466 = vpack.c.b16 %v1374, %v1373
    %v1467 = vpack.c.b16 %v1376, %v1375
    %v1468 = vpack.c.b16 %v1378, %v1377
    %v1469 = vpack.c.b16 %v1380, %v1379
    %v1470 = vpack.c.b16 %v1382, %v1381
    %v1471 = vpack.c.b16 %v1384, %v1383
    %v1472 = vpack.c.b16 %v1386, %v1385
    %v1473 = vpack.c.b16 %v1388, %v1387
    %v1474 = vpack.c.b16 %v1390, %v1389
    %v1475 = vpack.c.b16 %v1392, %v1391
    %v1476 = vpack.c.b16 %v1394, %v1393
    %v1477 = vpack.c.b16 %v1396, %v1395
    %v1478 = vpack.c.b16 %v1398, %v1397
    %v1479 = vpack.c.b16 %v1400, %v1399
    %v1480 = vpack.c.b16 %v1402, %v1401
    %v1481 = vpack.c.b16 %v1404, %v1403
    %v1482 = vpack.c.b16 %v1406, %v1405
    %v1483 = vpack.c.b16 %v1408, %v1407
    %v1484 = vpack.c.b16 %v1410, %v1409
    %v1485 = vpack.c.b16 %v1412, %v1411
    %v1486 = vpack.c.b16 %v1414, %v1413
    %v1487 = vpack.c.b16 %v1416, %v1415
    %v1488 = vpack.c.b16 %v1418, %v1417
    %v1489 = vpack.c.b16 %v1420, %v1419
    %v1490 = vpack.c.b16 %v1422, %v1421
    %v1491 = vpack.c.b16 %v1424, %v1423
    %v1492 = vpack.c.b16 %v1426, %v1425
    %v1493 = vpack.c.b16 %v1428, %v1427
    %v1494 = vpack.c.b16 %v1430, %v1429
    %v1495 = vpack.c.b16 %v1432, %v1431
    %v1496 = vpack.c.b16 %v1434, %v1433
    %v1497 = vpack.c.b16 %v1436, %v1435
    %v1498 = vpack.c.b16 %v1438, %v1437
    %v1499 = vpack.c.b16 %v1440, %v1439
    %v1500 = vpack.c.b16 %v1442, %v1441
    %v1501 = vpack.c.b16 %v1444, %v1443
    %v1502 = vpack.c.b16 %v1446, %v1445
    %v1503 = vpack.c.b16 %v1448, %v1447
    %v1504 = vpack.c.b16 %v1450, %v1449
    %v1505 = vpack.c.b16 %v1452, %v1451
    %v1506 = vpack.c.b16 %v1454, %v1453
    %v1507 = vpack.c.b16 %v1456, %v1455
    %v1508 = vpack.c.b16 %v1458, %v1457
    %v1509 = vpack.c.b16 %v1460, %v1459
    %v1510 = vpack.c.b16 %v1462, %v1461
    %1559 = vmatprep.subr.bf16.mxu0 0
    %1560 = vmatpush1.bf16.msra.mxu0 %v1463
    %1561 = vmatprep.subr.bf16.mxu0 0
    %1562 = vmatpush1.bf16.msra.mxu0 %v1464
    %1563 = vmatprep.subr.bf16.mxu0 0
    %1564 = vmatpush1.bf16.msra.mxu0 %v1465
    %1565 = vmatprep.subr.bf16.mxu0 0
    %1566 = vmatpush1.bf16.msra.mxu0 %v1466
    %1567 = vmatprep.subr.bf16.mxu0 0
    %1568 = vmatpush1.bf16.msra.mxu0 %v1467
    %1569 = vmatprep.subr.bf16.mxu0 0
    %1570 = vmatpush1.bf16.msra.mxu0 %v1468
    %1571 = vmatprep.subr.bf16.mxu0 0
    %1572 = vmatpush1.bf16.msra.mxu0 %v1469
    %1573 = vmatprep.subr.bf16.mxu0 0
    %1574 = vmatpush1.bf16.msra.mxu0 %v1470
    %1575 = vmatprep.subr.bf16.mxu0 0
    %1576 = vmatpush1.bf16.msra.mxu0 %v1471
    %1577 = vmatprep.subr.bf16.mxu0 0
    %1578 = vmatpush1.bf16.msra.mxu0 %v1472
    %1579 = vmatprep.subr.bf16.mxu0 0
    %1580 = vmatpush1.bf16.msra.mxu0 %v1473
    %1581 = vmatprep.subr.bf16.mxu0 0
    %1582 = vmatpush1.bf16.msra.mxu0 %v1474
    %1583 = vmatprep.subr.bf16.mxu0 0
    %1584 = vmatpush1.bf16.msra.mxu0 %v1475
    %1585 = vmatprep.subr.bf16.mxu0 0
    %1586 = vmatpush1.bf16.msra.mxu0 %v1476
    %1587 = vmatprep.subr.bf16.mxu0 0
    %1588 = vmatpush1.bf16.msra.mxu0 %v1477
    %1589 = vmatprep.subr.bf16.mxu0 0
    %1590 = vmatpush1.bf16.msra.mxu0 %v1478
    %1591 = vmatprep.mubr.bf16.mxu0 %v1163
    %1592 = vmatmul.mubr.bf16.gmra.mrb[0].mxu0 %v1162
    %v1593 = vpop.f32.mrb[0].mxu0
    %v1594 = vadd.f32 %v1269, %v1593
    %v1595 = vpop.f32.mrb[0].mxu0
    %v1596 = vpop.f32.mrb[0].mxu0
    %v1597 = vpop.f32.mrb[0].mxu0
    %1598 = vdwg.mxu0
    %1599 = vmatprep.subr.bf16.mxu0 0
    %1600 = vmatpush1.bf16.msra.mxu0 %v1479
    %1601 = vmatprep.subr.bf16.mxu0 0
    %1602 = vmatpush1.bf16.msra.mxu0 %v1480
    %1603 = vmatprep.subr.bf16.mxu0 0
    %1604 = vmatpush1.bf16.msra.mxu0 %v1481
    %1605 = vmatprep.subr.bf16.mxu0 0
    %1606 = vmatpush1.bf16.msra.mxu0 %v1482
    %1607 = vmatprep.subr.bf16.mxu0 0
    %1608 = vmatpush1.bf16.msra.mxu0 %v1483
    %1609 = vmatprep.subr.bf16.mxu0 0
    %1610 = vmatpush1.bf16.msra.mxu0 %v1484
    %1611 = vmatprep.subr.bf16.mxu0 0
    %1612 = vmatpush1.bf16.msra.mxu0 %v1485
    %1613 = vmatprep.subr.bf16.mxu0 0
    %1614 = vmatpush1.bf16.msra.mxu0 %v1486
    %1615 = vmatprep.subr.bf16.mxu0 0
    %1616 = vmatpush1.bf16.msra.mxu0 %v1487
    %1617 = vmatprep.subr.bf16.mxu0 0
    %1618 = vmatpush1.bf16.msra.mxu0 %v1488
    %1619 = vmatprep.subr.bf16.mxu0 0
    %1620 = vmatpush1.bf16.msra.mxu0 %v1489
    %1621 = vmatprep.subr.bf16.mxu0 0
    %1622 = vmatpush1.bf16.msra.mxu0 %v1490
    %1623 = vmatprep.subr.bf16.mxu0 0
    %1624 = vmatpush1.bf16.msra.mxu0 %v1491
    %1625 = vmatprep.subr.bf16.mxu0 0
    %1626 = vmatpush1.bf16.msra.mxu0 %v1492
    %1627 = vmatprep.subr.bf16.mxu0 0
    %1628 = vmatpush1.bf16.msra.mxu0 %v1493
    %1629 = vmatprep.subr.bf16.mxu0 0
    %1630 = vmatpush1.bf16.msra.mxu0 %v1494
    %1631 = vmatprep.mubr.bf16.mxu0 %v1165
    %1632 = vmatmul.mubr.bf16.gmra.mrb[0].mxu0 %v1164
    %v1633 = vpop.f32.mrb[0].mxu0
    %v1634 = vadd.f32 %v1594, %v1633
    %v1635 = vpop.f32.mrb[0].mxu0
    %v1636 = vpop.f32.mrb[0].mxu0
    %v1637 = vpop.f32.mrb[0].mxu0
    %1638 = vdwg.mxu0
    %1639 = vmatprep.subr.bf16.mxu0 0
    %1640 = vmatpush1.bf16.msra.mxu0 %v1495
    %1641 = vmatprep.subr.bf16.mxu0 0
    %1642 = vmatpush1.bf16.msra.mxu0 %v1496
    %1643 = vmatprep.subr.bf16.mxu0 0
    %1644 = vmatpush1.bf16.msra.mxu0 %v1497
    %1645 = vmatprep.subr.bf16.mxu0 0
    %1646 = vmatpush1.bf16.msra.mxu0 %v1498
    %1647 = vmatprep.subr.bf16.mxu0 0
    %1648 = vmatpush1.bf16.msra.mxu0 %v1499
    %1649 = vmatprep.subr.bf16.mxu0 0
    %1650 = vmatpush1.bf16.msra.mxu0 %v1500
    %1651 = vmatprep.subr.bf16.mxu0 0
    %1652 = vmatpush1.bf16.msra.mxu0 %v1501
    %1653 = vmatprep.subr.bf16.mxu0 0
    %1654 = vmatpush1.bf16.msra.mxu0 %v1502
    %1655 = vmatprep.subr.bf16.mxu0 0
    %1656 = vmatpush1.bf16.msra.mxu0 %v1503
    %1657 = vmatprep.subr.bf16.mxu0 0
    %1658 = vmatpush1.bf16.msra.mxu0 %v1504
    %1659 = vmatprep.subr.bf16.mxu0 0
    %1660 = vmatpush1.bf16.msra.mxu0 %v1505
    %1661 = vmatprep.subr.bf16.mxu0 0
    %1662 = vmatpush1.bf16.msra.mxu0 %v1506
    %1663 = vmatprep.subr.bf16.mxu0 0
    %1664 = vmatpush1.bf16.msra.mxu0 %v1507
    %1665 = vmatprep.subr.bf16.mxu0 0
    %1666 = vmatpush1.bf16.msra.mxu0 %v1508
    %1667 = vmatprep.subr.bf16.mxu0 0
    %1668 = vmatpush1.bf16.msra.mxu0 %v1509
    %1669 = vmatprep.subr.bf16.mxu0 0
    %1670 = vmatpush1.bf16.msra.mxu0 %v1510
    %1671 = vmatprep.mubr.bf16.mxu0 %v1167
    %1672 = vmatmul.mubr.bf16.gmra.mrb[0].mxu0 %v1166
    %v1673 = vpop.f32.mrb[0].mxu0
    %v1674 = vadd.f32 %v1634, %v1673
    %v1675 = vpop.f32.mrb[0].mxu0
    %v1676 = vpop.f32.mrb[0].mxu0
    %v1677 = vpop.f32.mrb[0].mxu0
    %1678 = vdwg.mxu0
    %1679 = vst [vmem:[#allocation10] sm:$0x3] %v1674
    // Predicated region
    $region46: #{tpu_custom_call.1} parent=1 // pred_check
      _
    $region47: #{tpu_custom_call.1} parent=1 // pred_check_branch
      %1681 = sbr.rel (0) target = $region49
    $region48: #{tpu_custom_call.1} parent=1 // pred_region
      %s1683 = ssub.s32 32, 32
      %1684 = vsyncadd [#allocation4], %s1683
      %s1686 = sshll.u32 [#allocation10], 4
      %s1687 = int_to_ptr.vmem [resolvable:$true] %s1686
      %1689 = dma.vmem_to_hbm [thread:$0]  %s1687, 32, %s7, [#allocation4]
    $region49: #{tpu_custom_call.1} parent=1 // pred_fallthru
      _
    // Predicated region
    $region50: #{tpu_custom_call.1} parent=1 // pred_check
      _
    $region51: #{tpu_custom_call.1} parent=1 // pred_check_branch
      %1691 = sbr.rel (0) target = $region53
    $region52: #{tpu_custom_call.1} parent=1 // pred_region
      %1692 = dma.done [#allocation4], 32
    $region53: #{tpu_custom_call.1} parent=1 // pred_fallthru
      _
    %1693 = vsyncpa [#allocation3], 1
    %1694 = vsyncpa [#allocation6], 1
    %1695 = vsyncpa [#allocation9], 1
    %1696 = vsyncpa [#allocation4], 1

</llo_original>
